<compile_context>
chip_gen: v7x
topology: tpu7x:2x2x1
jax: 0.10.0
libtpu: 0.0.40
codegen_flags: <defaults>
</compile_context>

<pallas_src>
import functools

import jax
import jax.numpy as jnp
from jax.experimental import pallas as pl
from jax.experimental.pallas import tpu as pltpu

LANE = 128


def _round_up(x, m):
    return ((x + m - 1) // m) * m


# -----------------------------------------------------------------------------
# Generation-aware scoped-VMEM limit (v7x: 64 MiB physical; v5e/v6e: 128 MiB).
# -----------------------------------------------------------------------------
@functools.lru_cache(maxsize=None)
def _vmem_limit_bytes():
    try:
        cap = int(pltpu.get_tpu_info().vmem_capacity_bytes)
    except Exception:
        cap = 128 * 1024 * 1024
    # leave headroom for double-buffered activation strips + internal scratch
    return min(48 * 1024 * 1024, int(cap * 0.55))


# -----------------------------------------------------------------------------
# Probe: XLU sublane rotate (pltpu.roll along the W axis).  Falls back to the
# (concat-lowered) jnp.roll if unsupported / different semantics on this stack.
# -----------------------------------------------------------------------------
@functools.lru_cache(maxsize=None)
def _xlu_roll_ok():
    def _k(x_ref, o_ref):
        o_ref[...] = pltpu.roll(x_ref[...], shift=1, axis=1)

    try:
        x = jnp.arange(10 * 16 * 64, dtype=jnp.float32)
        x = x.reshape(10, 16, 64).astype(jnp.bfloat16)
        y = pl.pallas_call(_k, out_shape=jax.ShapeDtypeStruct(x.shape, x.dtype))(x)
        return bool(jnp.array_equal(y, jnp.roll(x, 1, axis=1)))
    except Exception:
        return False


def _shift_w(v, shift, use_xlu_roll):
    """Cyclic shift along the W (sublane) axis of a (rows, W, C) tile."""
    w = v.shape[1]
    if use_xlu_roll and w >= 8 and w % 8 == 0:
        return pltpu.roll(v, shift=shift % w, axis=1)     # XLU rotate (free slot)
    return jnp.roll(v, shift, axis=1)                     # safe fallback


# -----------------------------------------------------------------------------
# Pallas kernel: one (batch, row-strip) step of a fused ConvBlock
# -----------------------------------------------------------------------------
def _convblock_kernel(x_ref, halo_ref, w_hbm, b_ref, scale_ref, shift_ref,
                      o_ref, w_vmem, w_sem, *,
                      tile_h, upsample, pool, sigmoid, use_xlu_roll):
    """Fused 3x3 conv (pad=1) + bias + ReLU + BN affine [+ sigmoid] [+ 2x2 pool].

    x_ref     : (1, THx, W, Cin)  bf16  input strip (THx = tile_h//2 if upsample)
    halo_ref  : (1, 1, 2, W, Cin) bf16  row above / below the strip (zero at edges)
    w_hbm     : (3, 3*Cin, Cc)    bf16  HBM-resident weights, (dy, dx*Cin+cin, cout)
    b_ref     : (1, Cc)           f32   conv bias
    scale_ref : (1, Cc)           f32   gamma / sqrt(running_var + eps)
    shift_ref : (1, Cc)           f32   beta - running_mean * scale
    o_ref     : (1, THo, Wo, Cs)        output strip (Cs < Cc only for the head)
    w_vmem    : (3, 3*Cin, Cc)    bf16  single-buffered weight scratch
    w_sem     : DMA semaphore (1,)
    """
    s = pl.program_id(1)

    # Weights stay in HBM and are copied once per image into a single-buffered
    # VMEM scratch (the BlockSpec pipeline would double-buffer them otherwise).
    @pl.when(s == 0)
    def _load_weights():
        cp = pltpu.make_async_copy(w_hbm, w_vmem, w_sem.at[0])
        cp.start()
        cp.wait()

    th = tile_h
    w_dim = x_ref.shape[2]
    cin = x_ref.shape[3]
    cc = w_vmem.shape[2]          # compute channels
    cs = o_ref.shape[3]           # stored channels

    # ---- assemble the (TH+2, W, Cin) halo'd strip (row halo concatenated on
    #      the cheap major axis; no (W+2) sublane-shifted padded layout) -------
    halo = halo_ref[0, 0]                                          # (2, W, Cin)
    slab = jnp.concatenate([halo[0:1], x_ref[0], halo[1:2]], axis=0)
    if upsample:
        # fused nearest-2x upsample in H: conv row r reads source row r // 2
        slab = jnp.repeat(slab, 2, axis=0)[1:th + 3]               # (TH+2, W, Cin)

    # ---- dx taps via rotate + boundary mask --------------------------------
    col = jax.lax.broadcasted_iota(jnp.int32, (1, w_dim, 1), 1)
    zero = jnp.zeros((), slab.dtype)
    left = jnp.where(col == 0, zero, _shift_w(slab, 1, use_xlu_roll))
    right = jnp.where(col == w_dim - 1, zero, _shift_w(slab, -1, use_xlu_roll))
    taps = jnp.concatenate([left, slab, right], axis=-1)           # (TH+2, W, 3*Cin)

    # ---- 3 accumulating MXU matmuls, K = 3*Cin (no 9x im2col copy) ----------
    acc = None
    for dy in range(3):
        a = taps[dy:dy + th].reshape(th * w_dim, 3 * cin)
        part = jnp.dot(a, w_vmem[dy], preferred_element_type=jnp.float32)
        acc = part if acc is None else acc + part

    # ---- epilogue in f32 on the VPU: bias -> ReLU -> BN [-> sigmoid] --------
    y = acc + b_ref[...]
    y = jnp.maximum(y, 0.0)
    y = y * scale_ref[...] + shift_ref[...]
    if sigmoid:
        y = jax.nn.sigmoid(y)
    if cs < cc:                   # head: store only the real output channels
        y = y[:, :cs]
    y = y.reshape(th, w_dim, cs)
    if pool:                      # fused MaxPool2d(2, 2)
        y = y.reshape(th // 2, 2, w_dim, cs).max(axis=1)
        y = y.reshape(th // 2, w_dim // 2, 2, cs).max(axis=2)
    o_ref[...] = y[None].astype(o_ref.dtype)


# -----------------------------------------------------------------------------
# Strip-size selection and halo gathering
# -----------------------------------------------------------------------------
def _choose_tile_h(h, w, cin, cout, need_even, budget_bytes=8 << 20, max_rows=8):
    """Largest strip height (divisor of H, even when pool/upsample require it)
    whose per-strip working set fits a conservative VMEM budget, capped so the
    grid keeps several steps per image for DMA/compute overlap."""
    cands = [d for d in range(1, h + 1)
             if h % d == 0 and not (need_even and d % 2)]
    if not cands:
        cands = [h]
    best = cands[0]
    for d in cands:
        est = ((d + 2) * w * cin * 2 * 4        # slab + left/right + 3-tap concat
               + d * w * cout * 4               # f32 accumulator
               + d * w * max(cout, cin) * 2)    # in/out strip
        if d <= max_rows and est <= budget_bytes:
            best = d
    return best


def _build_halo(x, thx, s):
    """halo[n, i, 0] = row above strip i (zeros for i == 0),
       halo[n, i, 1] = row below strip i (zeros for i == s - 1)."""
    n, hx, w, c = x.shape
    zero = jnp.zeros((n, 1, w, c), x.dtype)
    if s == 1:
        top = zero
        bot = zero
    else:
        top = jnp.concatenate([zero, x[:, thx - 1:hx - 1:thx]], axis=1)
        bot = jnp.concatenate([x[:, thx:hx:thx], zero], axis=1)
    return jnp.stack([top, bot], axis=2)        # (N, S, 2, W, C)


# -----------------------------------------------------------------------------
# pallas_call wrapper
# -----------------------------------------------------------------------------
def conv_block(x, w, b, scale, shift, *, pool=False, upsample=False,
               sigmoid=False, store_cout=None, out_dtype=jnp.bfloat16,
               tile_h=None):
    """One fused ConvBlock.

    x : (N, Hx, W, Cin) bf16.  When upsample=True, x is the pre-upsample
        activation already repeated 2x along W (the H repeat is fused in the
        kernel), i.e. the conv runs at resolution (2*Hx, W).
    w : (3, 3*Cin, Cc) bf16;  b / scale / shift : (1, Cc) f32.
    Returns (N, Ho, Wo, store_cout or Cc).
    """
    n, hx, w_dim, cin = x.shape
    h = 2 * hx if upsample else hx
    three, k3, cc = w.shape
    assert three == 3 and k3 == 3 * cin, (w.shape, cin)
    cs = cc if store_cout is None else store_cout
    ho, wo = (h // 2, w_dim // 2) if pool else (h, w_dim)

    if tile_h is None:
        tile_h = _choose_tile_h(h, w_dim, cin, cc, need_even=(pool or upsample))
    th = tile_h
    assert h % th == 0, (h, th)
    s = h // th
    thx = th // 2 if upsample else th
    tho = th // 2 if pool else th

    halo = _build_halo(x, thx, s)               # (N, S, 2, W, Cin)

    kernel = functools.partial(
        _convblock_kernel, tile_h=th, upsample=upsample, pool=pool,
        sigmoid=sigmoid, use_xlu_roll=_xlu_roll_ok())

    return pl.pallas_call(
        kernel,
        out_shape=jax.ShapeDtypeStruct((n, ho, wo, cs), out_dtype),
        grid_spec=pltpu.PrefetchScalarGridSpec(
            num_scalar_prefetch=0,
            grid=(n, s),
            in_specs=[
                pl.BlockSpec((1, thx, w_dim, cin), lambda ni, si: (ni, si, 0, 0)),
                pl.BlockSpec((1, 1, 2, w_dim, cin),
                             lambda ni, si: (ni, si, 0, 0, 0)),
                pl.BlockSpec(memory_space=pl.ANY),        # weights stay in HBM
                pl.BlockSpec((1, cc), lambda ni, si: (0, 0)),
                pl.BlockSpec((1, cc), lambda ni, si: (0, 0)),
                pl.BlockSpec((1, cc), lambda ni, si: (0, 0)),
            ],
            out_specs=pl.BlockSpec((1, tho, wo, cs),
                                   lambda ni, si: (ni, si, 0, 0)),
            scratch_shapes=[
                pltpu.VMEM((3, 3 * cin, cc), jnp.bfloat16),   # single-buffered W
                pltpu.SemaphoreType.DMA((1,)),
            ],
        ),
        compiler_params=pltpu.CompilerParams(
            # batch shards across cores; the strip axis stays ordered so the
            # s == 0 weight preload always runs before that image's strips.
            dimension_semantics=("parallel", "arbitrary"),
            vmem_limit_bytes=_vmem_limit_bytes(),
        ),
    )(x, halo, w, b, scale, shift)


# -----------------------------------------------------------------------------
# Architecture plan (matches TrackNet.__init__ exactly)
# -----------------------------------------------------------------------------
def build_layer_specs(in_features, out_features):
    # (cin, cout, pool_after, upsample_before)
    raw = [
        (in_features, 64, False, False),
        (64, 64, True, False),
        (64, 128, False, False),
        (128, 128, True, False),
        (128, 256, False, False),
        (256, 256, False, False),
        (256, 256, True, False),
        (256, 512, False, False),
        (512, 512, False, False),
        (512, 512, False, False),
        (512, 256, False, True),
        (256, 256, False, False),
        (256, 256, False, False),
        (256, 128, False, True),
        (128, 128, False, False),
        (128, 64, False, True),
        (64, 64, False, False),
        (64, out_features, False, False),
    ]
    specs = []
    n = len(raw)
    for i, (cin, cout, pool, up) in enumerate(raw):
        last = i == n - 1
        cin_pad = _round_up(cin, 8) if i == 0 else cin       # tiny first-layer Cin
        cout_c = _round_up(cout, LANE) if last else cout     # proven matmul width;
        specs.append(dict(cin=cin, cout=cout, cin_pad=cin_pad, cout_c=cout_c,
                          pool=pool, up=up, last=last))      # head stores cout only
    return specs


# -----------------------------------------------------------------------------
# Parameter init (deterministic, synthetic; BN is eval-mode affine)
# -----------------------------------------------------------------------------
def init_convblock_params(key, cin, cout, cin_pad, cout_c):
    kw, kb, kg, kbe, km, kv = jax.random.split(key, 6)
    fan_in = cin * 9
    w = (jax.random.normal(kw, (3, 3, cin, cout), jnp.float32)
         * jnp.sqrt(2.0 / fan_in))
    # zero-pad channel dims: padded input channels contribute nothing; padded
    # output channels are dropped before the store.
    w = jnp.pad(w, ((0, 0), (0, 0), (0, cin_pad - cin), (0, cout_c - cout)))
    w = w.reshape(3, 3 * cin_pad, cout_c).astype(jnp.bfloat16)

    b = 0.01 * jax.random.normal(kb, (cout,), jnp.float32)
    gamma = 1.0 + 0.1 * jax.random.normal(kg, (cout,), jnp.float32)
    beta = 0.1 * jax.random.normal(kbe, (cout,), jnp.float32)
    running_mean = 0.1 * jax.random.normal(km, (cout,), jnp.float32)
    running_var = 1.0 + 0.1 * jax.random.uniform(kv, (cout,), jnp.float32)
    eps = 1e-5
    scale = gamma / jnp.sqrt(running_var + eps)
    shift = beta - running_mean * scale

    b = jnp.pad(b, (0, cout_c - cout))
    scale = jnp.pad(scale, (0, cout_c - cout), constant_values=1.0)
    shift = jnp.pad(shift, (0, cout_c - cout))
    return dict(w=w, b=b[None, :], scale=scale[None, :], shift=shift[None, :])


def init_tracknet_params(key, specs):
    params = []
    for s in specs:
        key, sub = jax.random.split(key)
        params.append(init_convblock_params(sub, s["cin"], s["cout"],
                                             s["cin_pad"], s["cout_c"]))
    return params


# -----------------------------------------------------------------------------
# Forward pass
# -----------------------------------------------------------------------------
def tracknet_forward(x_nchw, params, specs, take_sigmoid=True):
    """x_nchw: (N, Cin, H, W) f32 -> (N, out_features, H, W) f32."""
    n, c, h, w = x_nchw.shape
    x = jnp.transpose(x_nchw, (0, 2, 3, 1)).astype(jnp.bfloat16)   # NCHW -> NHWC
    cin0 = specs[0]["cin_pad"]
    if cin0 > c:
        x = jnp.pad(x, ((0, 0), (0, 0), (0, 0), (0, cin0 - c)))

    for spec, p in zip(specs, params):
        if spec["up"]:
            # Nearest-2x upsample: the W repeat stays in the wrapper, the H
            # repeat is fused into the next conv kernel (reads row h // 2).
            # TODO(synk): fuse the W repeat too to remove the remaining 2x
            # HBM write+read per decoder stage.
            x = jnp.repeat(x, 2, axis=2)
        last = spec["last"]
        x = conv_block(x, p["w"], p["b"], p["scale"], p["shift"],
                       pool=spec["pool"], upsample=spec["up"],
                       sigmoid=(last and take_sigmoid),
                       store_cout=(spec["cout"] if last else None),
                       out_dtype=jnp.float32 if last else jnp.bfloat16)

    return jnp.transpose(x, (0, 3, 1, 2))       # NHWC (C = out_features) -> NCHW


# -----------------------------------------------------------------------------
# Pure-XLA reference (for self-checks)
# -----------------------------------------------------------------------------
def _ref_conv_block(x, w, b, scale, shift, *, pool, sigmoid):
    cin = x.shape[-1]
    cc = w.shape[-1]
    w4 = w.reshape(3, 3, cin, cc).astype(jnp.float32)
    y = jax.lax.conv_general_dilated(
        x.astype(jnp.float32), w4, window_strides=(1, 1), padding="SAME",
        dimension_numbers=("NHWC", "HWIO", "NHWC"))
    y = y + b.reshape(1, 1, 1, -1)
    y = jnp.maximum(y, 0.0)
    y = y * scale.reshape(1, 1, 1, -1) + shift.reshape(1, 1, 1, -1)
    if sigmoid:
        y = jax.nn.sigmoid(y)
    if pool:
        n, hh, ww, c = y.shape
        y = y.reshape(n, hh // 2, 2, ww // 2, 2, c).max(axis=(2, 4))
    return y


def _ref_forward(x_nchw, params, specs, take_sigmoid=True):
    n, c, h, w = x_nchw.shape
    x = jnp.transpose(x_nchw, (0, 2, 3, 1)).astype(jnp.bfloat16)
    cin0 = specs[0]["cin_pad"]
    if cin0 > c:
        x = jnp.pad(x, ((0, 0), (0, 0), (0, 0), (0, cin0 - c)))
    for spec, p in zip(specs, params):
        if spec["up"]:
            x = jnp.repeat(jnp.repeat(x, 2, axis=1), 2, axis=2)
        last = spec["last"]
        y = _ref_conv_block(x, p["w"], p["b"], p["scale"], p["shift"],
                            pool=spec["pool"], sigmoid=(last and take_sigmoid))
        x = y.astype(jnp.float32 if last else jnp.bfloat16)
    x = x[..., :specs[-1]["cout"]]
    return jnp.transpose(x, (0, 3, 1, 2))


def _check_single_blocks(key):
    """Validate each kernel variant (halo / pool / fused upsample / head)."""
    cfgs = [
        dict(cin=64, cout=64, h=16, w=16, pool=False, up=False, sig=False),
        dict(cin=64, cout=128, h=16, w=16, pool=True, up=False, sig=False),
        dict(cin=128, cout=64, h=8, w=8, pool=False, up=True, sig=False),
        dict(cin=64, cout=1, h=16, w=16, pool=False, up=False, sig=True,
             head=True),
    ]
    for i, c in enumerate(cfgs):
        key, k1, k2 = jax.random.split(key, 3)
        cc = _round_up(c["cout"], LANE) if c.get("head") else c["cout"]
        p = init_convblock_params(k1, c["cin"], c["cout"], c["cin"], cc)
        if c["up"]:
            xs = jax.random.normal(
                k2, (2, c["h"] // 2, c["w"] // 2, c["cin"]),
                jnp.float32).astype(jnp.bfloat16)
            x_in = jnp.repeat(xs, 2, axis=2)                 # W repeat in wrapper
            x_ref = jnp.repeat(jnp.repeat(xs, 2, axis=1), 2, axis=2)
        else:
            xs = jax.random.normal(k2, (2, c["h"], c["w"], c["cin"]),
                                   jnp.float32).astype(jnp.bfloat16)
            x_in, x_ref = xs, xs
        out = conv_block(x_in, p["w"], p["b"], p["scale"], p["shift"],
                         pool=c["pool"], upsample=c["up"], sigmoid=c["sig"],
                         store_cout=(c["cout"] if c.get("head") else None),
                         out_dtype=jnp.float32)
        ref = _ref_conv_block(x_ref, p["w"], p["b"], p["scale"], p["shift"],
                              pool=c["pool"], sigmoid=c["sig"])
        ref = ref[..., :out.shape[-1]]
        err = float(jnp.max(jnp.abs(out.astype(jnp.float32) - ref)))
        assert err < 2e-2, (i, err)


# -----------------------------------------------------------------------------
# Main
# -----------------------------------------------------------------------------
if __name__ == "__main__":
    IN_FEATURES = 3
    OUT_FEATURES = 1
    N, H, W = 2, 16, 16        # spatial divisible by 8 (3 pools / 3 upsamples)

    key = jax.random.PRNGKey(0)
    k_params, k_x, k_blk = jax.random.split(key, 3)

    # per-variant kernel checks against a pure-XLA reference
    _check_single_blocks(k_blk)

    specs = build_layer_specs(IN_FEATURES, OUT_FEATURES)
    params = init_tracknet_params(k_params, specs)

    x = jax.random.normal(k_x, (N, IN_FEATURES, H, W), jnp.float32)

    fwd = jax.jit(functools.partial(tracknet_forward, specs=specs,
                                    take_sigmoid=True))
    out = jax.block_until_ready(fwd(x, params))

    assert out.shape == (N, OUT_FEATURES, H, W), out.shape
    assert out.dtype == jnp.float32
    assert bool(jnp.all((out >= 0.0) & (out <= 1.0)))       # sigmoid range

    ref = _ref_forward(x, params, specs, take_sigmoid=True)
    err = float(jnp.max(jnp.abs(out - ref)))
    assert err < 5e-2, err

    print("KERNEL_OK")
</pallas_src>

<mosaic_0001>
module attributes {stable_mosaic.version = 11 : i64} {
  func.func @_k(%arg0: memref<10x16x64xbf16, #tpu.memory_space<vmem>>, %arg1: memref<10x16x64xbf16, #tpu.memory_space<vmem>>) attributes {dimension_semantics = [], scalar_prefetch = 0 : i64, scratch_operands = 0 : i64, tpu.core_type = #tpu.core_type<tc>} {
    %c0 = arith.constant 0 : index
    %c0_0 = arith.constant 0 : index
    %c0_1 = arith.constant 0 : index
    %0 = vector.load %arg0[%c0, %c0_0, %c0_1] : memref<10x16x64xbf16, #tpu.memory_space<vmem>>, vector<10x16x64xbf16>
    %c1_i32 = arith.constant 1 : i32
    %1 = tpu.dynamic_rotate %0 by %c1_i32 dim 1 : vector<10x16x64xbf16>, i32 -> vector<10x16x64xbf16>
    %c0_2 = arith.constant 0 : index
    %c0_3 = arith.constant 0 : index
    %c0_4 = arith.constant 0 : index
    %2 = vector.load %arg1[%c0_2, %c0_3, %c0_4] : memref<10x16x64xbf16, #tpu.memory_space<vmem>>, vector<10x16x64xbf16>
    tpu.vector_store %arg1[%c0_2, %c0_3, %c0_4], %1 {strides = array<i32>} : memref<10x16x64xbf16, #tpu.memory_space<vmem>>, vector<10x16x64xbf16>,
    return
  }
}

module attributes {stable_mosaic.version = 11 : i64} {
  func.func @_convblock_kernel(%arg0: i32, %arg1: i32, %arg2: memref<1x8x16x64xbf16, #tpu.memory_space<vmem>>, %arg3: memref<1x1x2x16x64xbf16, #tpu.memory_space<vmem>>, %arg4: memref<3x192x64xbf16, #tpu.memory_space<any>>, %arg5: memref<1x64xf32, #tpu.memory_space<vmem>>, %arg6: memref<1x64xf32, #tpu.memory_space<vmem>>, %arg7: memref<1x64xf32, #tpu.memory_space<vmem>>, %arg8: memref<1x8x16x64xf32, #tpu.memory_space<vmem>>, %arg9: memref<3x192x64xbf16, #tpu.memory_space<vmem>>, %arg10: memref<1x!tpu.dma_semaphore, #tpu.memory_space<semaphore_mem>>) attributes {dimension_semantics = [#tpu.dimension_semantics<parallel>, #tpu.dimension_semantics<arbitrary>], iteration_bounds = array<i64: 2, 2>, scalar_prefetch = 0 : i64, scratch_operands = 2 : i64, tpu.core_type = #tpu.core_type<tc>, window_params = [{transform_indices = @transform_0, window_bounds = array<i64: 1, 8, 16, 64>}, {transform_indices = @transform_1, window_bounds = array<i64: 1, 1, 2, 16, 64>}, {}, {pipeline_mode = #tpu.pipeline_mode<synchronous>, transform_indices = @transform_3, window_bounds = array<i64: 1, 64>}, {pipeline_mode = #tpu.pipeline_mode<synchronous>, transform_indices = @transform_4, window_bounds = array<i64: 1, 64>}, {pipeline_mode = #tpu.pipeline_mode<synchronous>, transform_indices = @transform_5, window_bounds = array<i64: 1, 64>}, {transform_indices = @transform_6, window_bounds = array<i64: 1, 8, 16, 64>}]} {
    %c0_i32 = arith.constant 0 : i32
    %0 = arith.cmpi eq, %arg1, %c0_i32 : i32
    %1 = arith.extui %0 : i1 to i32
    %c0_i32_0 = arith.constant 0 : i32
    %2 = arith.cmpi ne, %1, %c0_i32_0 : i32
    scf.if %2 {
      %c0_i32_32 = arith.constant 0 : i32
      %61 = tpu.memref_slice %arg10[%c0_i32_32] : memref<1x!tpu.dma_semaphore, #tpu.memory_space<semaphore_mem>> -> memref<1x!tpu.dma_semaphore, #tpu.memory_space<semaphore_mem>>
      %62 = tpu.memref_squeeze %61 : memref<1x!tpu.dma_semaphore, #tpu.memory_space<semaphore_mem>> -> memref<!tpu.dma_semaphore, #tpu.memory_space<semaphore_mem>>
      tpu.enqueue_dma source(%arg4 : memref<3x192x64xbf16, #tpu.memory_space<any>>) target(%arg9 : memref<3x192x64xbf16, #tpu.memory_space<vmem>>) target_semaphore(%62 : memref<!tpu.dma_semaphore, #tpu.memory_space<semaphore_mem>>)
      %c0_i32_33 = arith.constant 0 : i32
      %63 = tpu.memref_slice %arg10[%c0_i32_33] : memref<1x!tpu.dma_semaphore, #tpu.memory_space<semaphore_mem>> -> memref<1x!tpu.dma_semaphore, #tpu.memory_space<semaphore_mem>>
      %64 = tpu.memref_squeeze %63 : memref<1x!tpu.dma_semaphore, #tpu.memory_space<semaphore_mem>> -> memref<!tpu.dma_semaphore, #tpu.memory_space<semaphore_mem>>
      tpu.wait_dma2 semaphore(%64 : memref<!tpu.dma_semaphore, #tpu.memory_space<semaphore_mem>>) src(%arg4 : memref<3x192x64xbf16, #tpu.memory_space<any>>) dst(%arg9 : memref<3x192x64xbf16, #tpu.memory_space<vmem>>)
    } else {
    }
    %c0 = arith.constant 0 : index
    %c0_1 = arith.constant 0 : index
    %c0_2 = arith.constant 0 : index
    %c0_3 = arith.constant 0 : index
    %c0_4 = arith.constant 0 : index
    %3 = vector.load %arg3[%c0, %c0_1, %c0_2, %c0_3, %c0_4] : memref<1x1x2x16x64xbf16, #tpu.memory_space<vmem>>, vector<1x1x2x16x64xbf16>
    %4 = vector.shape_cast %3 : vector<1x1x2x16x64xbf16> to vector<2x16x64xbf16>
    %5 = vector.extract_strided_slice %4 {offsets = [0, 0, 0], sizes = [1, 16, 64], strides = [1, 1, 1]} : vector<2x16x64xbf16> to vector<1x16x64xbf16>
    %c0_5 = arith.constant 0 : index
    %c0_6 = arith.constant 0 : index
    %c0_7 = arith.constant 0 : index
    %c0_8 = arith.constant 0 : index
    %6 = vector.load %arg2[%c0_5, %c0_6, %c0_7, %c0_8] : memref<1x8x16x64xbf16, #tpu.memory_space<vmem>>, vector<1x8x16x64xbf16>
    %7 = vector.shape_cast %6 : vector<1x8x16x64xbf16> to vector<8x16x64xbf16>
    %8 = vector.extract_strided_slice %4 {offsets = [1, 0, 0], sizes = [1, 16, 64], strides = [1, 1, 1]} : vector<2x16x64xbf16> to vector<1x16x64xbf16>
    %9 = tpu.concatenate %5, %7, %8 in 0 : vector<1x16x64xbf16>, vector<8x16x64xbf16>, vector<1x16x64xbf16> -> vector<10x16x64xbf16>
    %10 = tpu.iota {dimensions = array<i32: 1>} : vector<1x16x1xi32>
    %c0_i32_9 = arith.constant 0 : i32
    %11 = vector.broadcast %c0_i32_9 : i32 to vector<1x16x1xi32>
    %12 = arith.cmpi eq, %10, %11 : vector<1x16x1xi32>
    %13 = vector.extract_strided_slice %9 {offsets = [0, 15, 0], sizes = [10, 1, 64], strides = [1, 1, 1]} : vector<10x16x64xbf16> to vector<10x1x64xbf16>
    %14 = vector.extract_strided_slice %9 {offsets = [0, 0, 0], sizes = [10, 15, 64], strides = [1, 1, 1]} : vector<10x16x64xbf16> to vector<10x15x64xbf16>
    %15 = tpu.concatenate %13, %14 in 1 : vector<10x1x64xbf16>, vector<10x15x64xbf16> -> vector<10x16x64xbf16>
    %cst = arith.constant 0.000000e+00 : bf16
    %16 = vector.shape_cast %12 : vector<1x16x1xi1> to vector<1x16x1xi1>
    %17 = vector.broadcast %16 : vector<1x16x1xi1> to vector<10x16x64xi1>
    %18 = vector.broadcast %cst : bf16 to vector<10x16x64xbf16>
    %19 = arith.select %17, %18, %15 : vector<10x16x64xi1>, vector<10x16x64xbf16>
    %c15_i32 = arith.constant 15 : i32
    %20 = vector.broadcast %c15_i32 : i32 to vector<1x16x1xi32>
    %21 = arith.cmpi eq, %10, %20 : vector<1x16x1xi32>
    %22 = vector.extract_strided_slice %9 {offsets = [0, 1, 0], sizes = [10, 15, 64], strides = [1, 1, 1]} : vector<10x16x64xbf16> to vector<10x15x64xbf16>
    %23 = vector.extract_strided_slice %9 {offsets = [0, 0, 0], sizes = [10, 1, 64], strides = [1, 1, 1]} : vector<10x16x64xbf16> to vector<10x1x64xbf16>
    %24 = tpu.concatenate %22, %23 in 1 : vector<10x15x64xbf16>, vector<10x1x64xbf16> -> vector<10x16x64xbf16>
    %cst_10 = arith.constant 0.000000e+00 : bf16
    %25 = vector.shape_cast %21 : vector<1x16x1xi1> to vector<1x16x1xi1>
    %26 = vector.broadcast %25 : vector<1x16x1xi1> to vector<10x16x64xi1>
    %27 = vector.broadcast %cst_10 : bf16 to vector<10x16x64xbf16>
    %28 = arith.select %26, %27, %24 : vector<10x16x64xi1>, vector<10x16x64xbf16>
    %29 = tpu.concatenate %19, %9, %28 in 2 : vector<10x16x64xbf16>, vector<10x16x64xbf16>, vector<10x16x64xbf16> -> vector<10x16x192xbf16>
    %30 = vector.extract_strided_slice %29 {offsets = [0, 0, 0], sizes = [8, 16, 192], strides = [1, 1, 1]} : vector<10x16x192xbf16> to vector<8x16x192xbf16>
    %31 = vector.shape_cast %30 : vector<8x16x192xbf16> to vector<128x192xbf16>
    %c0_11 = arith.constant 0 : index
    %c0_12 = arith.constant 0 : index
    %c0_13 = arith.constant 0 : index
    %32 = vector.load %arg9[%c0_11, %c0_12, %c0_13] : memref<3x192x64xbf16, #tpu.memory_space<vmem>>, vector<1x192x64xbf16>
    %33 = vector.shape_cast %32 : vector<1x192x64xbf16> to vector<192x64xbf16>
    %cst_14 = arith.constant dense<0.000000e+00> : vector<128x64xf32>
    %34 = tpu.matmul %31, %33, %cst_14 {dimension_numbers = #tpu.dot_dimension_numbers<[1], [0], [0], [1], [0, 0, 1, 1], [], []>} : vector<128x192xbf16>, vector<192x64xbf16>, vector<128x64xf32> -> vector<128x64xf32>
    %35 = vector.extract_strided_slice %29 {offsets = [1, 0, 0], sizes = [8, 16, 192], strides = [1, 1, 1]} : vector<10x16x192xbf16> to vector<8x16x192xbf16>
    %36 = vector.shape_cast %35 : vector<8x16x192xbf16> to vector<128x192xbf16>
    %c1 = arith.constant 1 : index
    %c0_15 = arith.constant 0 : index
    %c0_16 = arith.constant 0 : index
    %37 = vector.load %arg9[%c1, %c0_15, %c0_16] : memref<3x192x64xbf16, #tpu.memory_space<vmem>>, vector<1x192x64xbf16>
    %38 = vector.shape_cast %37 : vector<1x192x64xbf16> to vector<192x64xbf16>
    %cst_17 = arith.constant dense<0.000000e+00> : vector<128x64xf32>
    %39 = tpu.matmul %36, %38, %cst_17 {dimension_numbers = #tpu.dot_dimension_numbers<[1], [0], [0], [1], [0, 0, 1, 1], [], []>} : vector<128x192xbf16>, vector<192x64xbf16>, vector<128x64xf32> -> vector<128x64xf32>
    %40 = arith.addf %34, %39 : vector<128x64xf32>
    %41 = vector.extract_strided_slice %29 {offsets = [2, 0, 0], sizes = [8, 16, 192], strides = [1, 1, 1]} : vector<10x16x192xbf16> to vector<8x16x192xbf16>
    %42 = vector.shape_cast %41 : vector<8x16x192xbf16> to vector<128x192xbf16>
    %c2 = arith.constant 2 : index
    %c0_18 = arith.constant 0 : index
    %c0_19 = arith.constant 0 : index
    %43 = vector.load %arg9[%c2, %c0_18, %c0_19] : memref<3x192x64xbf16, #tpu.memory_space<vmem>>, vector<1x192x64xbf16>
    %44 = vector.shape_cast %43 : vector<1x192x64xbf16> to vector<192x64xbf16>
    %cst_20 = arith.constant dense<0.000000e+00> : vector<128x64xf32>
    %45 = tpu.matmul %42, %44, %cst_20 {dimension_numbers = #tpu.dot_dimension_numbers<[1], [0], [0], [1], [0, 0, 1, 1], [], []>} : vector<128x192xbf16>, vector<192x64xbf16>, vector<128x64xf32> -> vector<128x64xf32>
    %46 = arith.addf %40, %45 : vector<128x64xf32>
    %c0_21 = arith.constant 0 : index
    %c0_22 = arith.constant 0 : index
    %47 = vector.load %arg5[%c0_21, %c0_22] : memref<1x64xf32, #tpu.memory_space<vmem>>, vector<1x64xf32>
    %48 = vector.broadcast %47 : vector<1x64xf32> to vector<128x64xf32>
    %49 = arith.addf %46, %48 : vector<128x64xf32>
    %cst_23 = arith.constant 0.000000e+00 : f32
    %50 = vector.broadcast %cst_23 : f32 to vector<128x64xf32>
    %51 = arith.maximumf %49, %50 : vector<128x64xf32>
    %c0_24 = arith.constant 0 : index
    %c0_25 = arith.constant 0 : index
    %52 = vector.load %arg6[%c0_24, %c0_25] : memref<1x64xf32, #tpu.memory_space<vmem>>, vector<1x64xf32>
    %53 = vector.broadcast %52 : vector<1x64xf32> to vector<128x64xf32>
    %54 = arith.mulf %51, %53 : vector<128x64xf32>
    %c0_26 = arith.constant 0 : index
    %c0_27 = arith.constant 0 : index
    %55 = vector.load %arg7[%c0_26, %c0_27] : memref<1x64xf32, #tpu.memory_space<vmem>>, vector<1x64xf32>
    %56 = vector.broadcast %55 : vector<1x64xf32> to vector<128x64xf32>
    %57 = arith.addf %54, %56 : vector<128x64xf32>
    %58 = vector.shape_cast %57 : vector<128x64xf32> to vector<8x16x64xf32>
    %59 = vector.shape_cast %58 : vector<8x16x64xf32> to vector<1x8x16x64xf32>
    %c0_28 = arith.constant 0 : index
    %c0_29 = arith.constant 0 : index
    %c0_30 = arith.constant 0 : index
    %c0_31 = arith.constant 0 : index
    %60 = vector.load %arg8[%c0_28, %c0_29, %c0_30, %c0_31] : memref<1x8x16x64xf32, #tpu.memory_space<vmem>>, vector<1x8x16x64xf32>
    tpu.vector_store %arg8[%c0_28, %c0_29, %c0_30, %c0_31], %59 {strides = array<i32>} : memref<1x8x16x64xf32, #tpu.memory_space<vmem>>, vector<1x8x16x64xf32>,
    return
  }
  func.func @transform_0(%arg0: i32, %arg1: i32) -> (i32, i32, i32, i32) {
    %c0_i32 = arith.constant 0 : i32
    %c0_i32_0 = arith.constant 0 : i32
    %c0_i32_1 = arith.constant 0 : i32
    return %arg0, %arg1, %c0_i32, %c0_i32_0 : i32, i32, i32, i32
  }
  func.func @transform_1(%arg0: i32, %arg1: i32) -> (i32, i32, i32, i32, i32) {
    %c0_i32 = arith.constant 0 : i32
    %c0_i32_0 = arith.constant 0 : i32
    %c0_i32_1 = arith.constant 0 : i32
    %c0_i32_2 = arith.constant 0 : i32
    return %arg0, %arg1, %c0_i32, %c0_i32_0, %c0_i32_1 : i32, i32, i32, i32, i32
  }
  func.func @transform_3(%arg0: i32, %arg1: i32) -> (i32, i32) {
    %c0_i32 = arith.constant 0 : i32
    %c0_i32_0 = arith.constant 0 : i32
    %c0_i32_1 = arith.constant 0 : i32
    return %c0_i32, %c0_i32_0 : i32, i32
  }
  func.func @transform_4(%arg0: i32, %arg1: i32) -> (i32, i32) {
    %c0_i32 = arith.constant 0 : i32
    %c0_i32_0 = arith.constant 0 : i32
    %c0_i32_1 = arith.constant 0 : i32
    return %c0_i32, %c0_i32_0 : i32, i32
  }
  func.func @transform_5(%arg0: i32, %arg1: i32) -> (i32, i32) {
    %c0_i32 = arith.constant 0 : i32
    %c0_i32_0 = arith.constant 0 : i32
    %c0_i32_1 = arith.constant 0 : i32
    return %c0_i32, %c0_i32_0 : i32, i32
  }
  func.func @transform_6(%arg0: i32, %arg1: i32) -> (i32, i32, i32, i32) {
    %c0_i32 = arith.constant 0 : i32
    %c0_i32_0 = arith.constant 0 : i32
    %c0_i32_1 = arith.constant 0 : i32
    return %arg0, %arg1, %c0_i32, %c0_i32_0 : i32, i32, i32, i32
  }
}

</mosaic_0001>

<llo_original>
// kernel: tpu_custom_call.1
$region0: #{tpu_custom_call.1}
  #allocation0 [shape = 'u32[]', space=smem, size = 0x4, offset = 0x4, fixed_abs, tag = 'smem constant byte address 0x4 - core index']
  #allocation1 [shape = 'u32[144,128]{1,0:T(1,128)}', space=vmem, size = 0x12000, scoped, tag = 'internal scratch']
  #allocation2 [shape = 'bf16[3,192,64]{2,1,0:T(16,128)(2,1)}', space=vmem, size = 0x24000, scoped, tag = 'scratch operand']
  #allocation3 [shape = 's32[1]{0}', space=sflag, size = 0x4, scoped, tag = 'scratch operand']
  #allocation6 [shape = 's32[]', space=sflag, size = 0x4, offset = 0, fixed_abs, tag = 'sflag constant byte address 0x0 - dummy sync flag']
  %s0 = inlined_call_operand.vmem [shape: bf16[2,16,16,64], index: 0, kind: input, shape index: {}]
  %s1 = inlined_call_operand.vmem [shape: bf16[2,2,2,16,64], index: 1, kind: input, shape index: {}]
  %s2 = inlined_call_operand.vmem [shape: bf16[3,192,64], index: 2, kind: input, shape index: {}]
  %s3 = inlined_call_operand.vmem [shape: f32[1,64], index: 3, kind: input, shape index: {}]
  %s4 = inlined_call_operand.vmem [shape: f32[1,64], index: 4, kind: input, shape index: {}]
  %s5 = inlined_call_operand.vmem [shape: f32[1,64], index: 5, kind: input, shape index: {}]
  %s6 = inlined_call_operand.hbm [shape: f32[2,16,16,64], index: 6, kind: output, shape index: {}]
  %s7 = sld [smem:[#allocation0]]
  $region91: #{tpu_custom_call.1} parent=0
    _
  %s9 = ssub.s32 1, %s7
  %s10 = scalar_select 0, %s9, %s7
  $region1: #{tpu_custom_call.1} parent=0
    #allocation4 [shape = 'u8[131072]{0}', space=vmem, size = 0x20000, scoped, tag = 'output window, operand 0']
    #allocation5 [shape = 's32[2]{0}', space=sflag, size = 0x8, scoped, tag = 'scoped memory for tpu_custom_call.1']
    %11 = vsyncpa [#allocation5], 0
    %s12 = scalar_lea.sflag [#allocation5], 1
    %13 = vsyncpa %s12, 0
    loop: start=0, step=1, limit=6
    $region2: #{tpu_custom_call.1} parent=1 // loop_pre_header
      _
    $region3: #{tpu_custom_call.1} parent=1 // loop_header
      %s15 = sphi 0, %s19
      %p16 = scmp.ge.s32.totalorder %s15, 6
      %s22 = sphi 0, %s34
      %s23 = sphi 0, %s30
      %s24 = sphi 0, %s22
      %s25 = sphi 0, %s23
      %s26 = sphi 0, %s24
      %s27 = sphi 0, %s25
      %s39 = sphi 0, %s41
      %s42 = sphi 0, %s39
      %s43 = sphi 0, %s42
      %s59 = sphi 0, %s43
      %s67 = sphi 0, %s69
      %s70 = sphi 0, %s67
      %s71 = sphi 0, %s70
      %s87 = sphi 0, %s71
      %s91 = sphi 0, %s91
      %s93 = sphi 0, %s91
      %s94 = sphi 0, %s93
      %s108 = sphi 0, %s94
      %s112 = sphi 0, %s112
      %s114 = sphi 0, %s112
      %s115 = sphi 0, %s114
      %s129 = sphi 0, %s115
      %s133 = sphi 0, %s133
      %s135 = sphi 0, %s133
      %s136 = sphi 0, %s135
      %s150 = sphi 0, %s136
      %s158 = sphi 0, %s160
      %s161 = sphi 0, %s158
      %s162 = sphi 0, %s161
      %s178 = sphi 0, %s162
    $region4: #{tpu_custom_call.1} parent=1 // loop_header_branch
      %18 = sbr.rel (%p16) target = $region8
    $region5: #{tpu_custom_call.1} parent=1 // loop_body
      %s20 = ssub.s32 %s15, 1
      %s21 = ssub.s32 %s15, 2
      %s28 = sadd.s32 1, %s23
      %p29 = scmp.ge.s32.totalorder %s28, 2
      %s30 = scalar_select %p29, 0, %s28
      %s31 = sadd.s32 1, %s22
      %s32 = scalar_select %p29, %s31, %s22
      %p33 = scmp.ge.s32.totalorder %s32, 2
      %s34 = scalar_select %p33, 0, %s32
      %s35 = ssub.s32 %s22, %s34
      %s36 = ssub.s32 %s23, %s30
      %s37 = sor.u32 %s35, %s36
      %p38 = scmp.eq.s32.totalorder %s37, 0
      %s40 = sadd.s32 %s39, 1
      %s41 = scalar_select %p38, %s39, %s40
      %p44 = pneg %p38
      %p45 = scmp.eq.s32.totalorder %s15, 3
      %p46 = por %p44, %p45
      %p47 = scmp.ne.s32.totalorder %s39, %s42
      %p48 = scmp.eq.s32.totalorder %s15, 0
      %p49 = por %p47, %p48
      %p50 = scmp.ne.s32.totalorder %s39, %s42
      %p51 = scmp.eq.s32.totalorder %s20, 3
      %p52 = por %p50, %p51
      %p53 = scmp.ne.s32.totalorder %s42, %s43
      %p54 = scmp.eq.s32.totalorder %s20, 0
      %p55 = por %p53, %p54
      %p56 = scmp.ne.s32.totalorder %s42, %s43
      %p57 = scmp.eq.s32.totalorder %s21, 3
      %p58 = por %p56, %p57
      %p60 = scmp.ne.s32.totalorder %s43, %s59
      %p61 = scmp.eq.s32.totalorder %s21, 0
      %p62 = por %p60, %p61
      %s63 = ssub.s32 %s22, %s34
      %s64 = ssub.s32 %s23, %s30
      %s65 = sor.u32 %s63, %s64
      %p66 = scmp.eq.s32.totalorder %s65, 0
      %s68 = sadd.s32 %s67, 1
      %s69 = scalar_select %p66, %s67, %s68
      %p72 = pneg %p66
      %p73 = scmp.eq.s32.totalorder %s15, 3
      %p74 = por %p72, %p73
      %p75 = scmp.ne.s32.totalorder %s67, %s70
      %p76 = scmp.eq.s32.totalorder %s15, 0
      %p77 = por %p75, %p76
      %p78 = scmp.ne.s32.totalorder %s67, %s70
      %p79 = scmp.eq.s32.totalorder %s20, 3
      %p80 = por %p78, %p79
      %p81 = scmp.ne.s32.totalorder %s70, %s71
      %p82 = scmp.eq.s32.totalorder %s20, 0
      %p83 = por %p81, %p82
      %p84 = scmp.ne.s32.totalorder %s70, %s71
      %p85 = scmp.eq.s32.totalorder %s21, 3
      %p86 = por %p84, %p85
      %p88 = scmp.ne.s32.totalorder %s71, %s87
      %p89 = scmp.eq.s32.totalorder %s21, 0
      %p90 = por %p88, %p89
      %s92 = sadd.s32 %s91, 1
      %p95 = scmp.eq.s32.totalorder %s15, 3
      %p96 = scmp.ne.s32.totalorder %s91, %s93
      %p97 = scmp.eq.s32.totalorder %s15, 0
      %p98 = por %p96, %p97
      %p99 = scmp.ne.s32.totalorder %s91, %s93
      %p100 = scmp.eq.s32.totalorder %s20, 3
      %p101 = por %p99, %p100
      %p102 = scmp.ne.s32.totalorder %s93, %s94
      %p103 = scmp.eq.s32.totalorder %s20, 0
      %p104 = por %p102, %p103
      %p105 = scmp.ne.s32.totalorder %s93, %s94
      %p106 = scmp.eq.s32.totalorder %s21, 3
      %p107 = por %p105, %p106
      %p109 = scmp.ne.s32.totalorder %s94, %s108
      %p110 = scmp.eq.s32.totalorder %s21, 0
      %p111 = por %p109, %p110
      %s113 = sadd.s32 %s112, 1
      %p116 = scmp.eq.s32.totalorder %s15, 3
      %p117 = scmp.ne.s32.totalorder %s112, %s114
      %p118 = scmp.eq.s32.totalorder %s15, 0
      %p119 = por %p117, %p118
      %p120 = scmp.ne.s32.totalorder %s112, %s114
      %p121 = scmp.eq.s32.totalorder %s20, 3
      %p122 = por %p120, %p121
      %p123 = scmp.ne.s32.totalorder %s114, %s115
      %p124 = scmp.eq.s32.totalorder %s20, 0
      %p125 = por %p123, %p124
      %p126 = scmp.ne.s32.totalorder %s114, %s115
      %p127 = scmp.eq.s32.totalorder %s21, 3
      %p128 = por %p126, %p127
      %p130 = scmp.ne.s32.totalorder %s115, %s129
      %p131 = scmp.eq.s32.totalorder %s21, 0
      %p132 = por %p130, %p131
      %s134 = sadd.s32 %s133, 1
      %p137 = scmp.eq.s32.totalorder %s15, 3
      %p138 = scmp.ne.s32.totalorder %s133, %s135
      %p139 = scmp.eq.s32.totalorder %s15, 0
      %p140 = por %p138, %p139
      %p141 = scmp.ne.s32.totalorder %s133, %s135
      %p142 = scmp.eq.s32.totalorder %s20, 3
      %p143 = por %p141, %p142
      %p144 = scmp.ne.s32.totalorder %s135, %s136
      %p145 = scmp.eq.s32.totalorder %s20, 0
      %p146 = por %p144, %p145
      %p147 = scmp.ne.s32.totalorder %s135, %s136
      %p148 = scmp.eq.s32.totalorder %s21, 3
      %p149 = por %p147, %p148
      %p151 = scmp.ne.s32.totalorder %s136, %s150
      %p152 = scmp.eq.s32.totalorder %s21, 0
      %p153 = por %p151, %p152
      %s154 = ssub.s32 %s22, %s34
      %s155 = ssub.s32 %s23, %s30
      %s156 = sor.u32 %s154, %s155
      %p157 = scmp.eq.s32.totalorder %s156, 0
      %s159 = sadd.s32 %s158, 1
      %s160 = scalar_select %p157, %s158, %s159
      %p163 = pneg %p157
      %p164 = scmp.eq.s32.totalorder %s15, 3
      %p165 = por %p163, %p164
      %p166 = scmp.ne.s32.totalorder %s158, %s161
      %p167 = scmp.eq.s32.totalorder %s15, 0
      %p168 = por %p166, %p167
      %p169 = scmp.ne.s32.totalorder %s158, %s161
      %p170 = scmp.eq.s32.totalorder %s20, 3
      %p171 = por %p169, %p170
      %p172 = scmp.ne.s32.totalorder %s161, %s162
      %p173 = scmp.eq.s32.totalorder %s20, 0
      %p174 = por %p172, %p173
      %p175 = scmp.ne.s32.totalorder %s161, %s162
      %p176 = scmp.eq.s32.totalorder %s21, 3
      %p177 = por %p175, %p176
      %p179 = scmp.ne.s32.totalorder %s162, %s178
      %p180 = scmp.eq.s32.totalorder %s21, 0
      %p181 = por %p179, %p180
      %p182 = scmp.le.s32.totalorder 1, %s15
      %p183 = scmp.lt.s32.totalorder %s15, 5
      %p184 = pnand %p182, %p183
      %p185 = pneg %p184
      // Predicated region
      $region9: #{tpu_custom_call.1} parent=5 // pred_check
        _
      $region10: #{tpu_custom_call.1} parent=5 // pred_check_branch
        %187 = sbr.rel (%p184) target = $region12
      $region11: #{tpu_custom_call.1} parent=5 // pred_region
        %s188 = ssub.s32 %s15, 1
        // Predicated region
        $region13: #{tpu_custom_call.1} parent=11 // pred_check
          %p189 = pneg %p104
        $region14: #{tpu_custom_call.1} parent=11 // pred_check_branch
          %191 = sbr.rel (%p189) target = $region16
        $region15: #{tpu_custom_call.1} parent=11 // pred_region
          _
        $region16: #{tpu_custom_call.1} parent=11 // pred_fallthru
          _
        // Predicated region
        $region17: #{tpu_custom_call.1} parent=11 // pred_check
          %p192 = pneg %p125
        $region18: #{tpu_custom_call.1} parent=11 // pred_check_branch
          %194 = sbr.rel (%p192) target = $region20
        $region19: #{tpu_custom_call.1} parent=11 // pred_region
          _
        $region20: #{tpu_custom_call.1} parent=11 // pred_fallthru
          _
        // Predicated region
        $region21: #{tpu_custom_call.1} parent=11 // pred_check
          %p195 = pneg %p146
        $region22: #{tpu_custom_call.1} parent=11 // pred_check_branch
          %197 = sbr.rel (%p195) target = $region24
        $region23: #{tpu_custom_call.1} parent=11 // pred_region
          _
        $region24: #{tpu_custom_call.1} parent=11 // pred_fallthru
          _
      $region12: #{tpu_custom_call.1} parent=5 // pred_fallthru
        _
      %p198 = scmp.lt.s32.totalorder %s15, 4
      // Predicated region
      $region25: #{tpu_custom_call.1} parent=5 // pred_check
        %p199 = pneg %p198
      $region26: #{tpu_custom_call.1} parent=5 // pred_check_branch
        %201 = sbr.rel (%p199) target = $region28
      $region27: #{tpu_custom_call.1} parent=5 // pred_region
        // Predicated region
        $region29: #{tpu_custom_call.1} parent=27 // pred_check
          %p202 = pneg %p49
        $region30: #{tpu_custom_call.1} parent=27 // pred_check_branch
          %204 = sbr.rel (%p202) target = $region32
        $region31: #{tpu_custom_call.1} parent=27 // pred_region
          %s205 = smul.u32 8, %s23
          %p206 = scmp.lt.s32.totalorder %s22, 1
          %s207 = scalar_select %p206, %s22, 1
          %p208 = scmp.lt.s32.totalorder %s205, 15
          %s209 = scalar_select %p208, %s205, 15
          %s210 = smul.addr %s209, 2
          %s211 = smul.addr %s207, 32
          %s212 = sadd.s32 %s210, %s211
          %s213 = smul.addr %s212, 4
          %s214 = scalar_lea.vmem %s0, %s213
          %s215 = smul.u32 8, %s23
        $region32: #{tpu_custom_call.1} parent=27 // pred_fallthru
          _
        // Predicated region
        $region33: #{tpu_custom_call.1} parent=27 // pred_check
          %p216 = pneg %p77
        $region34: #{tpu_custom_call.1} parent=27 // pred_check_branch
          %218 = sbr.rel (%p216) target = $region36
        $region35: #{tpu_custom_call.1} parent=27 // pred_region
          %p219 = scmp.lt.s32.totalorder %s22, 1
          %s220 = scalar_select %p219, %s22, 1
          %p221 = scmp.lt.s32.totalorder %s23, 1
          %s222 = scalar_select %p221, %s23, 1
          %s223 = smul.addr %s222, 4
          %s224 = smul.addr %s220, 8
          %s225 = sadd.s32 %s223, %s224
          %s226 = smul.addr %s225, 4
          %s227 = scalar_lea.vmem %s1, %s226
        $region36: #{tpu_custom_call.1} parent=27 // pred_fallthru
          _
      $region28: #{tpu_custom_call.1} parent=5 // pred_fallthru
        _
      %p228 = scmp.le.s32.totalorder 1, %s15
      %p229 = scmp.lt.s32.totalorder %s15, 5
      %p230 = pnand %p228, %p229
      %p231 = pneg %p230
      // Predicated region
      $region37: #{tpu_custom_call.1} parent=5 // pred_check
        _
      $region38: #{tpu_custom_call.1} parent=5 // pred_check_branch
        %233 = sbr.rel (%p230) target = $region40
      $region39: #{tpu_custom_call.1} parent=5 // pred_region
        %s234 = ssub.s32 %s15, 1
        %s235 = smul.u32 8, %s25
        %p236 = scmp.lt.s32.totalorder %s24, 1
        %s237 = scalar_select %p236, %s24, 1
        %p238 = scmp.lt.s32.totalorder %s235, 15
        %s239 = scalar_select %p238, %s235, 15
        %s240 = smul.addr %s239, 2
        %s241 = smul.addr %s237, 32
        %s242 = sadd.s32 %s240, %s241
        %s243 = smul.addr %s242, 4
        %s244 = scalar_lea.vmem %s0, %s243
        %p245 = pneg %p55
        %p246 = pneg %p52
        %p247 = scmp.lt.s32.totalorder %s24, 1
        %s248 = scalar_select %p247, %s24, 1
        %p249 = scmp.lt.s32.totalorder %s25, 1
        %s250 = scalar_select %p249, %s25, 1
        %s251 = smul.addr %s250, 4
        %s252 = smul.addr %s248, 8
        %s253 = sadd.s32 %s251, %s252
        %s254 = smul.addr %s253, 4
        %s255 = scalar_lea.vmem %s1, %s254
        %p256 = pneg %p83
        %p257 = pneg %p80
        %p258 = pneg %p104
        %p259 = pneg %p101
        %p260 = pneg %p125
        %p261 = pneg %p122
        %p262 = pneg %p146
        %p263 = pneg %p143
        %p264 = pneg %p174
        %p265 = pneg %p171
        %s266 = sand.u32 %s161, 1
        %s267 = scalar_lea.sflag [#allocation5], %s266
        %s268 = sand.u32 %s161, 1
        %s269 = smul.addr %s268, 128
        %s270 = scalar_lea.vmem [#allocation4], %s269
        %s271 = smul.u32 8, %s25
        %p272 = scmp.lt.s32.totalorder %s24, 1
        %s273 = scalar_select %p272, %s24, 1
        %p274 = scmp.lt.s32.totalorder %s271, 15
        %s275 = scalar_select %p274, %s271, 15
        %s276 = smul.addr %s275, 2
        %s277 = smul.addr %s273, 32
        %s278 = sadd.s32 %s276, %s277
        %s279 = smul.addr %s278, 4
        %s280 = scalar_lea.vmem %s0, %s279
        %s281 = smul.u32 8, %s25
        %p282 = scmp.lt.s32.totalorder %s24, 1
        %s283 = scalar_select %p282, %s24, 1
        %p284 = scmp.lt.s32.totalorder %s25, 1
        %s285 = scalar_select %p284, %s25, 1
        %s286 = smul.addr %s285, 4
        %s287 = smul.addr %s283, 8
        %s288 = sadd.s32 %s286, %s287
        %s289 = smul.addr %s288, 4
        %s290 = scalar_lea.vmem %s1, %s289
        %s291 = smul.u32 8, %s25
        %p295 = scmp.eq.s32.totalorder %s25, 0
        // Predicated region
        $region41: #{tpu_custom_call.1} parent=39 // pred_check
          %p296 = pneg %p295
        $region42: #{tpu_custom_call.1} parent=39 // pred_check_branch
          %298 = sbr.rel (%p296) target = $region44
        $region43: #{tpu_custom_call.1} parent=39 // pred_region
          %p300 = scmp.lt.u32.totalorder 288, 8
          %p301 = pneg %p300
          // Predicated region
          $region45: #{tpu_custom_call.1} parent=43 // pred_check
            _
          $region46: #{tpu_custom_call.1} parent=43 // pred_check_branch
            %303 = sbr.rel (%p300) target = $region48
          $region47: #{tpu_custom_call.1} parent=43 // pred_region
            %s318 = sand.u32 288, 7
            %p319 = scmp.eq.s32.totalorder %s318, 0
            // Predicated region
            $region60: #{tpu_custom_call.1} parent=47 // pred_check
              %p320 = pneg %p319
            $region61: #{tpu_custom_call.1} parent=47 // pred_check_branch
              %322 = sbr.rel (%p320) target = $region63
            $region62: #{tpu_custom_call.1} parent=47 // pred_region
              loop: start=0, step=1, limit=1
              $region64: #{tpu_custom_call.1} parent=62 // loop_pre_header
                _
              $region65: #{tpu_custom_call.1} parent=62 // loop_header
                %s324 = sphi 0, %s328
                %p325 = scmp.ge.s32.totalorder %s324, 1
                %s329 = sphi %s2, %s2
                %s330 = sphi [#allocation2], [#allocation2]
              $region66: #{tpu_custom_call.1} parent=62 // loop_header_branch
                %327 = sbr.rel (%p325) target = $region70
              $region67: #{tpu_custom_call.1} parent=62 // loop_body
                %v331 = vld [vmem:[%s329] sm:$0xff]
                %332 = vst [vmem:[%s330] sm:$0xff] %v331
                %v333 = vld [vmem:[%s329 + $0x8] sm:$0xff]
                %334 = vst [vmem:[%s330 + $0x8] sm:$0xff] %v333
                %v335 = vld [vmem:[%s329 + $0x10] sm:$0xff]
                %336 = vst [vmem:[%s330 + $0x10] sm:$0xff] %v335
                %v337 = vld [vmem:[%s329 + $0x18] sm:$0xff]
                %338 = vst [vmem:[%s330 + $0x18] sm:$0xff] %v337
                %v339 = vld [vmem:[%s329 + $0x20] sm:$0xff]
                %340 = vst [vmem:[%s330 + $0x20] sm:$0xff] %v339
                %v341 = vld [vmem:[%s329 + $0x28] sm:$0xff]
                %342 = vst [vmem:[%s330 + $0x28] sm:$0xff] %v341
                %v343 = vld [vmem:[%s329 + $0x30] sm:$0xff]
                %344 = vst [vmem:[%s330 + $0x30] sm:$0xff] %v343
                %v345 = vld [vmem:[%s329 + $0x38] sm:$0xff]
                %346 = vst [vmem:[%s330 + $0x38] sm:$0xff] %v345
                %v347 = vld [vmem:[%s329 + $0x40] sm:$0xff]
                %348 = vst [vmem:[%s330 + $0x40] sm:$0xff] %v347
                %v349 = vld [vmem:[%s329 + $0x48] sm:$0xff]
                %350 = vst [vmem:[%s330 + $0x48] sm:$0xff] %v349
                %v351 = vld [vmem:[%s329 + $0x50] sm:$0xff]
                %352 = vst [vmem:[%s330 + $0x50] sm:$0xff] %v351
                %v353 = vld [vmem:[%s329 + $0x58] sm:$0xff]
                %354 = vst [vmem:[%s330 + $0x58] sm:$0xff] %v353
                %v355 = vld [vmem:[%s329 + $0x60] sm:$0xff]
                %356 = vst [vmem:[%s330 + $0x60] sm:$0xff] %v355
                %v357 = vld [vmem:[%s329 + $0x68] sm:$0xff]
                %358 = vst [vmem:[%s330 + $0x68] sm:$0xff] %v357
                %v359 = vld [vmem:[%s329 + $0x70] sm:$0xff]
                %360 = vst [vmem:[%s330 + $0x70] sm:$0xff] %v359
                %v361 = vld [vmem:[%s329 + $0x78] sm:$0xff]
                %362 = vst [vmem:[%s330 + $0x78] sm:$0xff] %v361
                %v363 = vld [vmem:[%s329 + $0x80] sm:$0xff]
                %364 = vst [vmem:[%s330 + $0x80] sm:$0xff] %v363
                %v365 = vld [vmem:[%s329 + $0x88] sm:$0xff]
                %366 = vst [vmem:[%s330 + $0x88] sm:$0xff] %v365
                %v367 = vld [vmem:[%s329 + $0x90] sm:$0xff]
                %368 = vst [vmem:[%s330 + $0x90] sm:$0xff] %v367
                %v369 = vld [vmem:[%s329 + $0x98] sm:$0xff]
                %370 = vst [vmem:[%s330 + $0x98] sm:$0xff] %v369
                %v371 = vld [vmem:[%s329 + $0xa0] sm:$0xff]
                %372 = vst [vmem:[%s330 + $0xa0] sm:$0xff] %v371
                %v373 = vld [vmem:[%s329 + $0xa8] sm:$0xff]
                %374 = vst [vmem:[%s330 + $0xa8] sm:$0xff] %v373
                %v375 = vld [vmem:[%s329 + $0xb0] sm:$0xff]
                %376 = vst [vmem:[%s330 + $0xb0] sm:$0xff] %v375
                %v377 = vld [vmem:[%s329 + $0xb8] sm:$0xff]
                %378 = vst [vmem:[%s330 + $0xb8] sm:$0xff] %v377
                %v379 = vld [vmem:[%s329 + $0xc0] sm:$0xff]
                %380 = vst [vmem:[%s330 + $0xc0] sm:$0xff] %v379
                %v381 = vld [vmem:[%s329 + $0xc8] sm:$0xff]
                %382 = vst [vmem:[%s330 + $0xc8] sm:$0xff] %v381
                %v383 = vld [vmem:[%s329 + $0xd0] sm:$0xff]
                %384 = vst [vmem:[%s330 + $0xd0] sm:$0xff] %v383
                %v385 = vld [vmem:[%s329 + $0xd8] sm:$0xff]
                %386 = vst [vmem:[%s330 + $0xd8] sm:$0xff] %v385
                %v387 = vld [vmem:[%s329 + $0xe0] sm:$0xff]
                %388 = vst [vmem:[%s330 + $0xe0] sm:$0xff] %v387
                %v389 = vld [vmem:[%s329 + $0xe8] sm:$0xff]
                %390 = vst [vmem:[%s330 + $0xe8] sm:$0xff] %v389
                %v391 = vld [vmem:[%s329 + $0xf0] sm:$0xff]
                %392 = vst [vmem:[%s330 + $0xf0] sm:$0xff] %v391
                %v393 = vld [vmem:[%s329 + $0xf8] sm:$0xff]
                %394 = vst [vmem:[%s330 + $0xf8] sm:$0xff] %v393
                %v395 = vld [vmem:[%s329 + $0x100] sm:$0xff]
                %396 = vst [vmem:[%s330 + $0x100] sm:$0xff] %v395
                %v397 = vld [vmem:[%s329 + $0x108] sm:$0xff]
                %398 = vst [vmem:[%s330 + $0x108] sm:$0xff] %v397
                %v399 = vld [vmem:[%s329 + $0x110] sm:$0xff]
                %400 = vst [vmem:[%s330 + $0x110] sm:$0xff] %v399
                %v401 = vld [vmem:[%s329 + $0x118] sm:$0xff]
                %402 = vst [vmem:[%s330 + $0x118] sm:$0xff] %v401
              $region68: #{tpu_custom_call.1} parent=62 // loop_footer
                %s328 = sadd.s32 1, %s324
              $region69: #{tpu_custom_call.1} parent=62 // loop_footer_branch
                %323 = sbr.rel target = $region65
              $region70: #{tpu_custom_call.1} parent=62 // loop_exit
                _
            $region63: #{tpu_custom_call.1} parent=47 // pred_fallthru
              _
            %p403 = pneg %p319
            // Predicated region
            $region71: #{tpu_custom_call.1} parent=47 // pred_check
              _
            $region72: #{tpu_custom_call.1} parent=47 // pred_check_branch
              %405 = sbr.rel (%p319) target = $region74
            $region73: #{tpu_custom_call.1} parent=47 // pred_region
              %s406 = sand.u32 288, 7
            $region74: #{tpu_custom_call.1} parent=47 // pred_fallthru
              _
          $region48: #{tpu_custom_call.1} parent=43 // pred_fallthru
            _
          // Predicated region
          $region49: #{tpu_custom_call.1} parent=43 // pred_check
            %p304 = pneg %p300
          $region50: #{tpu_custom_call.1} parent=43 // pred_check_branch
            %306 = sbr.rel (%p304) target = $region52
          $region51: #{tpu_custom_call.1} parent=43 // pred_region
            %s307 = sshllo.u32 0, 288
            loop: start=0, step=1, limit=1
            $region53: #{tpu_custom_call.1} parent=51 // loop_pre_header
              _
            $region54: #{tpu_custom_call.1} parent=51 // loop_header
              %s309 = sphi 0, %s313
              %p310 = scmp.ge.s32.totalorder %s309, 1
              %s314 = sphi %s2, %s2
              %s315 = sphi [#allocation2], [#allocation2]
            $region55: #{tpu_custom_call.1} parent=51 // loop_header_branch
              %312 = sbr.rel (%p310) target = $region59
            $region56: #{tpu_custom_call.1} parent=51 // loop_body
              %v316 = vld [vmem:[%s314] sm:%s307]
              %317 = vst [vmem:[%s315] sm:%s307] %v316
            $region57: #{tpu_custom_call.1} parent=51 // loop_footer
              %s313 = sadd.s32 1, %s309
            $region58: #{tpu_custom_call.1} parent=51 // loop_footer_branch
              %308 = sbr.rel target = $region54
            $region59: #{tpu_custom_call.1} parent=51 // loop_exit
              _
          $region52: #{tpu_custom_call.1} parent=43 // pred_fallthru
            _
          // Predicated region
          $region75: #{tpu_custom_call.1} parent=43 // pred_check
            _
          $region76: #{tpu_custom_call.1} parent=43 // pred_check_branch
            %409 = sbr.rel (0) target = $region78
          $region77: #{tpu_custom_call.1} parent=43 // pred_region
            %410 = vsyncadd [#allocation3], 4608
          $region78: #{tpu_custom_call.1} parent=43 // pred_fallthru
            _
          %s411 = smul.u32 4, 3
          %s412 = smul.u32 %s411, 24
          %s413 = smul.u32 %s412, 1
          %s414 = sshll.u32 %s413, 4
          %415 = dma.done [#allocation3], %s414
        $region44: #{tpu_custom_call.1} parent=39 // pred_fallthru
          _
        %v416 = vld [vmem:[%s290] sm:$0xf]
        %v417 = vld [vmem:[%s290 + $0x4] sm:$0xf]
        %v418 = vld [vmem:[%s290 + $0x8] sm:$0xf]
        %v419 = vld [vmem:[%s290 + $0xc] sm:$0xf]
        %v420 = vld [vmem:[%s280] sm:$0xf]
        %v421 = vld [vmem:[%s280 + $0x4] sm:$0xf]
        %v422 = vld [vmem:[%s280 + $0x8] sm:$0xf]
        %v423 = vld [vmem:[%s280 + $0xc] sm:$0xf]
        %v424 = vld [vmem:[%s280 + $0x10] sm:$0xf]
        %v425 = vld [vmem:[%s280 + $0x14] sm:$0xf]
        %v426 = vld [vmem:[%s280 + $0x18] sm:$0xf]
        %v427 = vld [vmem:[%s280 + $0x1c] sm:$0xf]
        %v428 = vld [vmem:[%s280 + $0x20] sm:$0xf]
        %v429 = vld [vmem:[%s280 + $0x24] sm:$0xf]
        %v430 = vld [vmem:[%s280 + $0x28] sm:$0xf]
        %v431 = vld [vmem:[%s280 + $0x2c] sm:$0xf]
        %v432 = vld [vmem:[%s280 + $0x30] sm:$0xf]
        %v433 = vld [vmem:[%s280 + $0x34] sm:$0xf]
        %v434 = vld [vmem:[%s280 + $0x38] sm:$0xf]
        %v435 = vld [vmem:[%s280 + $0x3c] sm:$0xf]
        %v436 = vlaneseq
        %v437 = vshrl.u32 %v436, 7
        %v438 = vadd.s32 %v437, 8
        %vm439 = vcmp.eq.s32.totalorder %v437, 0
        %vm440 = vcmp.eq.s32.totalorder %v438, 0
        %v451 = vunpack.c.l.b16 %v417
        %v452 = vunpack.c.l.b16 %v421
        %v453 = vunpack.c.l.b16 %v423
        %v454 = vunpack.c.l.b16 %v425
        %v455 = vunpack.c.l.b16 %v427
        %v456 = vunpack.c.l.b16 %v429
        %v457 = vunpack.c.l.b16 %v431
        %v458 = vunpack.c.l.b16 %v433
        %v459 = vunpack.c.l.b16 %v435
        %v460 = vunpack.c.l.b16 %v419
        %v461 = vpack.c.b16 %v451, %v451
        %v462 = vpack.c.b16 %v452, %v452
        %v463 = vpack.c.b16 %v453, %v453
        %v464 = vpack.c.b16 %v454, %v454
        %v465 = vpack.c.b16 %v455, %v455
        %v466 = vpack.c.b16 %v456, %v456
        %v467 = vpack.c.b16 %v457, %v457
        %v468 = vpack.c.b16 %v458, %v458
        %v469 = vpack.c.b16 %v459, %v459
        %v470 = vpack.c.b16 %v460, %v460
        %v472 = vshrl.u32 %v461, 16
        %v474 = vrot.slane %v472, 3
        %v476 = vshrl.u32 %v462, 16
        %v478 = vrot.slane %v476, 3
        %v480 = vshrl.u32 %v463, 16
        %v482 = vrot.slane %v480, 3
        %v484 = vshrl.u32 %v464, 16
        %v486 = vrot.slane %v484, 3
        %v488 = vshrl.u32 %v465, 16
        %v490 = vrot.slane %v488, 3
        %v492 = vshrl.u32 %v466, 16
        %v494 = vrot.slane %v492, 3
        %v496 = vshrl.u32 %v467, 16
        %v498 = vrot.slane %v496, 3
        %v500 = vshrl.u32 %v468, 16
        %v502 = vrot.slane %v500, 3
        %v504 = vshrl.u32 %v469, 16
        %v506 = vrot.slane %v504, 3
        %v508 = vshrl.u32 %v470, 16
        %v510 = vrot.slane %v508, 3
        %v531 = vunpack.c.l.b16 %v416
        %v532 = vunpack.c.l.b16 %v420
        %v533 = vunpack.c.l.b16 %v422
        %v534 = vunpack.c.l.b16 %v424
        %v535 = vunpack.c.l.b16 %v426
        %v536 = vunpack.c.l.b16 %v428
        %v537 = vunpack.c.l.b16 %v430
        %v538 = vunpack.c.l.b16 %v432
        %v539 = vunpack.c.l.b16 %v434
        %v540 = vunpack.c.l.b16 %v418
        %v541 = vpack.c.b16 %v451, %v531
        %v542 = vpack.c.b16 %v452, %v532
        %v543 = vpack.c.b16 %v453, %v533
        %v544 = vpack.c.b16 %v454, %v534
        %v545 = vpack.c.b16 %v455, %v535
        %v546 = vpack.c.b16 %v456, %v536
        %v547 = vpack.c.b16 %v457, %v537
        %v548 = vpack.c.b16 %v458, %v538
        %v549 = vpack.c.b16 %v459, %v539
        %v550 = vpack.c.b16 %v460, %v540
        %v552 = vshrl.u32 %v541, 16
        %v554 = vrot.slane %v552, 7
        %v555 = vshll.u32 %v541, 16
        %v557 = vor.u32 %v554, %v555
        %v559 = vshrl.u32 %v542, 16
        %v561 = vrot.slane %v559, 7
        %v562 = vshll.u32 %v542, 16
        %v564 = vor.u32 %v561, %v562
        %v566 = vshrl.u32 %v543, 16
        %v568 = vrot.slane %v566, 7
        %v569 = vshll.u32 %v543, 16
        %v571 = vor.u32 %v568, %v569
        %v573 = vshrl.u32 %v544, 16
        %v575 = vrot.slane %v573, 7
        %v576 = vshll.u32 %v544, 16
        %v578 = vor.u32 %v575, %v576
        %v580 = vshrl.u32 %v545, 16
        %v582 = vrot.slane %v580, 7
        %v583 = vshll.u32 %v545, 16
        %v585 = vor.u32 %v582, %v583
        %v587 = vshrl.u32 %v546, 16
        %v589 = vrot.slane %v587, 7
        %v590 = vshll.u32 %v546, 16
        %v592 = vor.u32 %v589, %v590
        %v594 = vshrl.u32 %v547, 16
        %v596 = vrot.slane %v594, 7
        %v597 = vshll.u32 %v547, 16
        %v599 = vor.u32 %v596, %v597
        %v601 = vshrl.u32 %v548, 16
        %v603 = vrot.slane %v601, 7
        %v604 = vshll.u32 %v548, 16
        %v606 = vor.u32 %v603, %v604
        %v608 = vshrl.u32 %v549, 16
        %v610 = vrot.slane %v608, 7
        %v611 = vshll.u32 %v549, 16
        %v613 = vor.u32 %v610, %v611
        %v615 = vshrl.u32 %v550, 16
        %v617 = vrot.slane %v615, 7
        %v618 = vshll.u32 %v550, 16
        %v620 = vor.u32 %v617, %v618
        %vm631 = vcmask 1040384
        %vm632 = vsmask.f32 256
        %vm633 = vmand %vm631, %vm632
        %v634 = vsel %vm633, %v474, %v557
        %v635 = vsel %vm633, %v478, %v564
        %v636 = vsel %vm633, %v482, %v571
        %v637 = vsel %vm633, %v486, %v578
        %v638 = vsel %vm633, %v490, %v585
        %v639 = vsel %vm633, %v494, %v592
        %v640 = vsel %vm633, %v498, %v599
        %v641 = vsel %vm633, %v502, %v606
        %v642 = vsel %vm633, %v506, %v613
        %v643 = vsel %vm633, %v510, %v620
        %v644 = vsel %vm439, 1, 0
        %v645 = vsel %vm440, 1, 0
        %vm646 = vcmp.eq.s32.totalorder %v644, 1
        %vm647 = vcmp.eq.s32.totalorder %v645, 1
        %vm648 = vmpackc.low %vm646, %vm646
        %vm649 = vmpackc.low %vm647, %vm647
        %v650 = vsel %vm648, 65537, 0
        %v651 = vsel %vm649, 65537, 0
        %v652 = vunpack.c.l.b16 %v650
        %v653 = vunpack.c.l.b16 %v651
        %v654 = vpack.c.b16 %v653, %v652
        %vm655 = vcmp.ne.s16.totalorder %v654, 0
        %v656 = vsel %vm655, 0, %v634
        %v657 = vsel %vm655, 0, %v635
        %v658 = vsel %vm655, 0, %v636
        %v659 = vsel %vm655, 0, %v637
        %v660 = vsel %vm655, 0, %v638
        %v661 = vsel %vm655, 0, %v639
        %v662 = vsel %vm655, 0, %v640
        %v663 = vsel %vm655, 0, %v641
        %v664 = vsel %vm655, 0, %v642
        %v665 = vsel %vm655, 0, %v643
        %vm666 = vcmp.eq.s32.totalorder %v437, 15
        %vm667 = vcmp.eq.s32.totalorder %v438, 15
        %v668 = vrot.slane %v555, 1
        %v669 = vor.u32 %v552, %v668
        %v670 = vrot.slane %v562, 1
        %v671 = vor.u32 %v559, %v670
        %v672 = vrot.slane %v569, 1
        %v673 = vor.u32 %v566, %v672
        %v674 = vrot.slane %v576, 1
        %v675 = vor.u32 %v573, %v674
        %v676 = vrot.slane %v583, 1
        %v677 = vor.u32 %v580, %v676
        %v678 = vrot.slane %v590, 1
        %v679 = vor.u32 %v587, %v678
        %v680 = vrot.slane %v597, 1
        %v681 = vor.u32 %v594, %v680
        %v682 = vrot.slane %v604, 1
        %v683 = vor.u32 %v601, %v682
        %v684 = vrot.slane %v611, 1
        %v685 = vor.u32 %v608, %v684
        %v686 = vrot.slane %v618, 1
        %v687 = vor.u32 %v615, %v686
        %v698 = vpack.c.b16 %v531, %v531
        %v699 = vpack.c.b16 %v532, %v532
        %v700 = vpack.c.b16 %v533, %v533
        %v701 = vpack.c.b16 %v534, %v534
        %v702 = vpack.c.b16 %v535, %v535
        %v703 = vpack.c.b16 %v536, %v536
        %v704 = vpack.c.b16 %v537, %v537
        %v705 = vpack.c.b16 %v538, %v538
        %v706 = vpack.c.b16 %v539, %v539
        %v707 = vpack.c.b16 %v540, %v540
        %v709 = vshll.u32 %v698, 16
        %v711 = vrot.slane %v709, 1
        %v713 = vshll.u32 %v699, 16
        %v715 = vrot.slane %v713, 1
        %v717 = vshll.u32 %v700, 16
        %v719 = vrot.slane %v717, 1
        %v721 = vshll.u32 %v701, 16
        %v723 = vrot.slane %v721, 1
        %v725 = vshll.u32 %v702, 16
        %v727 = vrot.slane %v725, 1
        %v729 = vshll.u32 %v703, 16
        %v731 = vrot.slane %v729, 1
        %v733 = vshll.u32 %v704, 16
        %v735 = vrot.slane %v733, 1
        %v737 = vshll.u32 %v705, 16
        %v739 = vrot.slane %v737, 1
        %v741 = vshll.u32 %v706, 16
        %v743 = vrot.slane %v741, 1
        %v745 = vshll.u32 %v707, 16
        %v747 = vrot.slane %v745, 1
        %vm758 = vcmask 1047552
        %vm759 = vsmask.f32 7424
        %vm760 = vmand %vm758, %vm759
        %v761 = vsel %vm760, %v669, %v711
        %v762 = vsel %vm760, %v671, %v715
        %v763 = vsel %vm760, %v673, %v719
        %v764 = vsel %vm760, %v675, %v723
        %v765 = vsel %vm760, %v677, %v727
        %v766 = vsel %vm760, %v679, %v731
        %v767 = vsel %vm760, %v681, %v735
        %v768 = vsel %vm760, %v683, %v739
        %v769 = vsel %vm760, %v685, %v743
        %v770 = vsel %vm760, %v687, %v747
        %v771 = vsel %vm666, 1, 0
        %v772 = vsel %vm667, 1, 0
        %vm773 = vcmp.eq.s32.totalorder %v771, 1
        %vm774 = vcmp.eq.s32.totalorder %v772, 1
        %vm775 = vmpackc.low %vm773, %vm773
        %vm776 = vmpackc.low %vm774, %vm774
        %v777 = vsel %vm775, 65537, 0
        %v778 = vsel %vm776, 65537, 0
        %v779 = vunpack.c.l.b16 %v777
        %v780 = vunpack.c.l.b16 %v778
        %v781 = vpack.c.b16 %v780, %v779
        %vm782 = vcmp.ne.s16.totalorder %v781, 0
        %v783 = vsel %vm782, 0, %v761
        %v784 = vsel %vm782, 0, %v762
        %v785 = vsel %vm782, 0, %v763
        %v786 = vsel %vm782, 0, %v764
        %v787 = vsel %vm782, 0, %v765
        %v788 = vsel %vm782, 0, %v766
        %v789 = vsel %vm782, 0, %v767
        %v790 = vsel %vm782, 0, %v768
        %v791 = vsel %vm782, 0, %v769
        %v792 = vsel %vm782, 0, %v770
        %793 = vrot.lane.b32.xlu0 %v541, 64
        %v794 = vpop.permute.xlu0 %793
        %795 = vrot.lane.b32.xlu0 %v542, 64
        %v796 = vpop.permute.xlu0 %795
        %797 = vrot.lane.b32.xlu0 %v543, 64
        %v798 = vpop.permute.xlu0 %797
        %799 = vrot.lane.b32.xlu0 %v544, 64
        %v800 = vpop.permute.xlu0 %799
        %801 = vrot.lane.b32.xlu0 %v545, 64
        %v802 = vpop.permute.xlu0 %801
        %803 = vrot.lane.b32.xlu0 %v546, 64
        %v804 = vpop.permute.xlu0 %803
        %805 = vrot.lane.b32.xlu0 %v547, 64
        %v806 = vpop.permute.xlu0 %805
        %807 = vrot.lane.b32.xlu0 %v548, 64
        %v808 = vpop.permute.xlu0 %807
        %809 = vrot.lane.b32.xlu0 %v549, 64
        %v810 = vpop.permute.xlu0 %809
        %811 = vrot.lane.b32.xlu0 %v550, 64
        %v812 = vpop.permute.xlu0 %811
        %vm813 = vcmask 523264
        %v816 = vsel %vm813, %v656, %v794
        %v820 = vsel %vm813, %v657, %v796
        %v824 = vsel %vm813, %v658, %v798
        %v828 = vsel %vm813, %v659, %v800
        %v832 = vsel %vm813, %v660, %v802
        %v836 = vsel %vm813, %v661, %v804
        %v840 = vsel %vm813, %v662, %v806
        %v844 = vsel %vm813, %v663, %v808
        %v848 = vsel %vm813, %v664, %v810
        %v852 = vsel %vm813, %v665, %v812
        %v854 = vld [vmem:[#allocation2] sm:$0xff]
        %v855 = vld [vmem:[#allocation2 + $0x8] sm:$0xff]
        %v856 = vld [vmem:[#allocation2 + $0x10] sm:$0xff]
        %v857 = vld [vmem:[#allocation2 + $0x18] sm:$0xff]
        %v858 = vld [vmem:[#allocation2 + $0x20] sm:$0xff]
        %v859 = vld [vmem:[#allocation2 + $0x28] sm:$0xff]
        %v860 = vld [vmem:[#allocation2 + $0x30] sm:$0xff]
        %v861 = vld [vmem:[#allocation2 + $0x38] sm:$0xff]
        %v862 = vld [vmem:[#allocation2 + $0x40] sm:$0xff]
        %v863 = vld [vmem:[#allocation2 + $0x48] sm:$0xff]
        %v864 = vld [vmem:[#allocation2 + $0x50] sm:$0xff]
        %v865 = vld [vmem:[#allocation2 + $0x58] sm:$0xff]
        %s866 = scalar_lea.vmem [#allocation2], 96
        %v867 = vld [vmem:[%s866] sm:$0xff]
        %v868 = vld [vmem:[%s866 + $0x8] sm:$0xff]
        %v869 = vld [vmem:[%s866 + $0x10] sm:$0xff]
        %v870 = vld [vmem:[%s866 + $0x18] sm:$0xff]
        %v871 = vld [vmem:[%s866 + $0x20] sm:$0xff]
        %v872 = vld [vmem:[%s866 + $0x28] sm:$0xff]
        %v873 = vld [vmem:[%s866 + $0x30] sm:$0xff]
        %v874 = vld [vmem:[%s866 + $0x38] sm:$0xff]
        %v875 = vld [vmem:[%s866 + $0x40] sm:$0xff]
        %v876 = vld [vmem:[%s866 + $0x48] sm:$0xff]
        %v877 = vld [vmem:[%s866 + $0x50] sm:$0xff]
        %v878 = vld [vmem:[%s866 + $0x58] sm:$0xff]
        %v880 = vsel %vm813, %v784, 0
        %v883 = vsel %vm813, %v785, 0
        %v886 = vsel %vm813, %v786, 0
        %v889 = vsel %vm813, %v787, 0
        %v892 = vsel %vm813, %v788, 0
        %v895 = vsel %vm813, %v789, 0
        %v898 = vsel %vm813, %v790, 0
        %v901 = vsel %vm813, %v791, 0
        %903 = vmatprep.subr.bf16.mxu0 0
        %904 = vmatpush1.bf16.msra.mxu0 %v867
        %905 = vmatprep.subr.bf16.mxu0 0
        %906 = vmatpush1.bf16.msra.mxu0 %v868
        %907 = vmatprep.subr.bf16.mxu0 0
        %908 = vmatpush1.bf16.msra.mxu0 %v869
        %909 = vmatprep.subr.bf16.mxu0 0
        %910 = vmatpush1.bf16.msra.mxu0 %v870
        %911 = vmatprep.subr.bf16.mxu0 0
        %912 = vmatpush1.bf16.msra.mxu0 %v871
        %913 = vmatprep.subr.bf16.mxu0 0
        %914 = vmatpush1.bf16.msra.mxu0 %v872
        %915 = vmatprep.subr.bf16.mxu0 0
        %916 = vmatpush1.bf16.msra.mxu0 %v873
        %917 = vmatprep.subr.bf16.mxu0 0
        %918 = vmatpush1.bf16.msra.mxu0 %v874
        %919 = vmatprep.subr.bf16.mxu0 0
        %920 = vmatpush1.bf16.msra.mxu0 %v875
        %921 = vmatprep.subr.bf16.mxu0 0
        %922 = vmatpush1.bf16.msra.mxu0 %v876
        %923 = vmatprep.subr.bf16.mxu0 0
        %924 = vmatpush1.bf16.msra.mxu0 %v877
        %925 = vmatprep.subr.bf16.mxu0 0
        %926 = vmatpush1.bf16.msra.mxu0 %v878
        %927 = vmatprep.subr.bf16.mxu0 0
        %928 = vmatpush1.bf16.msra.mxu0 0
        %929 = vmatprep.subr.bf16.mxu0 0
        %930 = vmatpush1.bf16.msra.mxu0 0
        %931 = vmatprep.subr.bf16.mxu0 0
        %932 = vmatpush1.bf16.msra.mxu0 0
        %933 = vmatprep.subr.bf16.mxu0 0
        %934 = vmatpush1.bf16.msra.mxu0 0
        %935 = vmatprep.mubr.bf16.mxu0 %v880
        %936 = vmatmul.mubr.bf16.gmra.mrb[0].mxu0 %v820
        %v937 = vpop.f32.mrb[0].mxu0
        %v938 = vadd.f32 0.0, %v937
        %v939 = vpop.f32.mrb[0].mxu0
        %v940 = vpop.f32.mrb[0].mxu0
        %v941 = vadd.f32 0.0, %v940
        %v942 = vpop.f32.mrb[0].mxu0
        %943 = vmatprep.mubr.bf16.mxu0 %v883
        %944 = vmatmul.mubr.bf16.gmra.mrb[0].mxu0 %v824
        %v945 = vpop.f32.mrb[0].mxu0
        %v946 = vadd.f32 0.0, %v945
        %v947 = vpop.f32.mrb[0].mxu0
        %v948 = vpop.f32.mrb[0].mxu0
        %v949 = vadd.f32 0.0, %v948
        %v950 = vpop.f32.mrb[0].mxu0
        %951 = vmatprep.mubr.bf16.mxu0 %v886
        %952 = vmatmul.mubr.bf16.gmra.mrb[0].mxu0 %v828
        %v953 = vpop.f32.mrb[0].mxu0
        %v954 = vadd.f32 0.0, %v953
        %v955 = vpop.f32.mrb[0].mxu0
        %v956 = vpop.f32.mrb[0].mxu0
        %v957 = vadd.f32 0.0, %v956
        %v958 = vpop.f32.mrb[0].mxu0
        %959 = vmatprep.mubr.bf16.mxu0 %v889
        %960 = vmatmul.mubr.bf16.gmra.mrb[0].mxu0 %v832
        %v961 = vpop.f32.mrb[0].mxu0
        %v962 = vadd.f32 0.0, %v961
        %v963 = vpop.f32.mrb[0].mxu0
        %v964 = vpop.f32.mrb[0].mxu0
        %v965 = vadd.f32 0.0, %v964
        %v966 = vpop.f32.mrb[0].mxu0
        %967 = vmatprep.mubr.bf16.mxu0 %v892
        %968 = vmatmul.mubr.bf16.gmra.mrb[0].mxu0 %v836
        %v969 = vpop.f32.mrb[0].mxu0
        %v970 = vadd.f32 0.0, %v969
        %v971 = vpop.f32.mrb[0].mxu0
        %v972 = vpop.f32.mrb[0].mxu0
        %v973 = vadd.f32 0.0, %v972
        %v974 = vpop.f32.mrb[0].mxu0
        %975 = vmatprep.mubr.bf16.mxu0 %v895
        %976 = vmatmul.mubr.bf16.gmra.mrb[0].mxu0 %v840
        %v977 = vpop.f32.mrb[0].mxu0
        %v978 = vadd.f32 0.0, %v977
        %v979 = vpop.f32.mrb[0].mxu0
        %v980 = vpop.f32.mrb[0].mxu0
        %v981 = vadd.f32 0.0, %v980
        %v982 = vpop.f32.mrb[0].mxu0
        %983 = vmatprep.mubr.bf16.mxu0 %v898
        %984 = vmatmul.mubr.bf16.gmra.mrb[0].mxu0 %v844
        %v985 = vpop.f32.mrb[0].mxu0
        %v986 = vadd.f32 0.0, %v985
        %v987 = vpop.f32.mrb[0].mxu0
        %v988 = vpop.f32.mrb[0].mxu0
        %v989 = vadd.f32 0.0, %v988
        %v990 = vpop.f32.mrb[0].mxu0
        %991 = vmatprep.mubr.bf16.mxu0 %v901
        %992 = vmatmul.mubr.bf16.gmra.mrb[0].mxu0 %v848
        %v993 = vpop.f32.mrb[0].mxu0
        %v994 = vadd.f32 0.0, %v993
        %v995 = vpop.f32.mrb[0].mxu0
        %v996 = vpop.f32.mrb[0].mxu0
        %v997 = vadd.f32 0.0, %v996
        %v998 = vpop.f32.mrb[0].mxu0
        %999 = vdwg.mxu0
        %v1001 = vsel %vm813, %v783, 0
        %1003 = vmatprep.subr.bf16.mxu0 0
        %1004 = vmatpush1.bf16.msra.mxu0 %v854
        %1005 = vmatprep.subr.bf16.mxu0 0
        %1006 = vmatpush1.bf16.msra.mxu0 %v855
        %1007 = vmatprep.subr.bf16.mxu0 0
        %1008 = vmatpush1.bf16.msra.mxu0 %v856
        %1009 = vmatprep.subr.bf16.mxu0 0
        %1010 = vmatpush1.bf16.msra.mxu0 %v857
        %1011 = vmatprep.subr.bf16.mxu0 0
        %1012 = vmatpush1.bf16.msra.mxu0 %v858
        %1013 = vmatprep.subr.bf16.mxu0 0
        %1014 = vmatpush1.bf16.msra.mxu0 %v859
        %1015 = vmatprep.subr.bf16.mxu0 0
        %1016 = vmatpush1.bf16.msra.mxu0 %v860
        %1017 = vmatprep.subr.bf16.mxu0 0
        %1018 = vmatpush1.bf16.msra.mxu0 %v861
        %1019 = vmatprep.subr.bf16.mxu0 0
        %1020 = vmatpush1.bf16.msra.mxu0 %v862
        %1021 = vmatprep.subr.bf16.mxu0 0
        %1022 = vmatpush1.bf16.msra.mxu0 %v863
        %1023 = vmatprep.subr.bf16.mxu0 0
        %1024 = vmatpush1.bf16.msra.mxu0 %v864
        %1025 = vmatprep.subr.bf16.mxu0 0
        %1026 = vmatpush1.bf16.msra.mxu0 %v865
        %1027 = vmatprep.subr.bf16.mxu0 0
        %1028 = vmatpush1.bf16.msra.mxu0 0
        %1029 = vmatprep.subr.bf16.mxu0 0
        %1030 = vmatpush1.bf16.msra.mxu0 0
        %1031 = vmatprep.subr.bf16.mxu0 0
        %1032 = vmatpush1.bf16.msra.mxu0 0
        %1033 = vmatprep.subr.bf16.mxu0 0
        %1034 = vmatpush1.bf16.msra.mxu0 0
        %1035 = vmatprep.mubr.bf16.mxu0 %v1001
        %1036 = vmatmul.mubr.bf16.gmra.mrb[0].mxu0 %v816
        %v1037 = vpop.f32.mrb[0].mxu0
        %v1038 = vadd.f32 %v938, %v1037
        %v1039 = vpop.f32.mrb[0].mxu0
        %v1040 = vpop.f32.mrb[0].mxu0
        %v1041 = vadd.f32 %v941, %v1040
        %v1042 = vpop.f32.mrb[0].mxu0
        %1043 = vmatprep.mubr.bf16.mxu0 %v880
        %1044 = vmatmul.mubr.bf16.gmra.mrb[0].mxu0 %v820
        %v1045 = vpop.f32.mrb[0].mxu0
        %v1046 = vadd.f32 %v946, %v1045
        %v1047 = vpop.f32.mrb[0].mxu0
        %v1048 = vpop.f32.mrb[0].mxu0
        %v1049 = vadd.f32 %v949, %v1048
        %v1050 = vpop.f32.mrb[0].mxu0
        %1051 = vmatprep.mubr.bf16.mxu0 %v883
        %1052 = vmatmul.mubr.bf16.gmra.mrb[0].mxu0 %v824
        %v1053 = vpop.f32.mrb[0].mxu0
        %v1054 = vadd.f32 %v954, %v1053
        %v1055 = vpop.f32.mrb[0].mxu0
        %v1056 = vpop.f32.mrb[0].mxu0
        %v1057 = vadd.f32 %v957, %v1056
        %v1058 = vpop.f32.mrb[0].mxu0
        %1059 = vmatprep.mubr.bf16.mxu0 %v886
        %1060 = vmatmul.mubr.bf16.gmra.mrb[0].mxu0 %v828
        %v1061 = vpop.f32.mrb[0].mxu0
        %v1062 = vadd.f32 %v962, %v1061
        %v1063 = vpop.f32.mrb[0].mxu0
        %v1064 = vpop.f32.mrb[0].mxu0
        %v1065 = vadd.f32 %v965, %v1064
        %v1066 = vpop.f32.mrb[0].mxu0
        %1067 = vmatprep.mubr.bf16.mxu0 %v889
        %1068 = vmatmul.mubr.bf16.gmra.mrb[0].mxu0 %v832
        %v1069 = vpop.f32.mrb[0].mxu0
        %v1070 = vadd.f32 %v970, %v1069
        %v1071 = vpop.f32.mrb[0].mxu0
        %v1072 = vpop.f32.mrb[0].mxu0
        %v1073 = vadd.f32 %v973, %v1072
        %v1074 = vpop.f32.mrb[0].mxu0
        %1075 = vmatprep.mubr.bf16.mxu0 %v892
        %1076 = vmatmul.mubr.bf16.gmra.mrb[0].mxu0 %v836
        %v1077 = vpop.f32.mrb[0].mxu0
        %v1078 = vadd.f32 %v978, %v1077
        %v1079 = vpop.f32.mrb[0].mxu0
        %v1080 = vpop.f32.mrb[0].mxu0
        %v1081 = vadd.f32 %v981, %v1080
        %v1082 = vpop.f32.mrb[0].mxu0
        %1083 = vmatprep.mubr.bf16.mxu0 %v895
        %1084 = vmatmul.mubr.bf16.gmra.mrb[0].mxu0 %v840
        %v1085 = vpop.f32.mrb[0].mxu0
        %v1086 = vadd.f32 %v986, %v1085
        %v1087 = vpop.f32.mrb[0].mxu0
        %v1088 = vpop.f32.mrb[0].mxu0
        %v1089 = vadd.f32 %v989, %v1088
        %v1090 = vpop.f32.mrb[0].mxu0
        %1091 = vmatprep.mubr.bf16.mxu0 %v898
        %1092 = vmatmul.mubr.bf16.gmra.mrb[0].mxu0 %v844
        %v1093 = vpop.f32.mrb[0].mxu0
        %v1094 = vadd.f32 %v994, %v1093
        %v1095 = vpop.f32.mrb[0].mxu0
        %v1096 = vpop.f32.mrb[0].mxu0
        %v1097 = vadd.f32 %v997, %v1096
        %v1098 = vpop.f32.mrb[0].mxu0
        %1099 = vdwg.mxu0
        %s1100 = scalar_lea.vmem [#allocation2], 192
        %v1101 = vld [vmem:[%s1100] sm:$0xff]
        %v1102 = vld [vmem:[%s1100 + $0x8] sm:$0xff]
        %v1103 = vld [vmem:[%s1100 + $0x10] sm:$0xff]
        %v1104 = vld [vmem:[%s1100 + $0x18] sm:$0xff]
        %v1105 = vld [vmem:[%s1100 + $0x20] sm:$0xff]
        %v1106 = vld [vmem:[%s1100 + $0x28] sm:$0xff]
        %v1107 = vld [vmem:[%s1100 + $0x30] sm:$0xff]
        %v1108 = vld [vmem:[%s1100 + $0x38] sm:$0xff]
        %v1109 = vld [vmem:[%s1100 + $0x40] sm:$0xff]
        %v1110 = vld [vmem:[%s1100 + $0x48] sm:$0xff]
        %v1111 = vld [vmem:[%s1100 + $0x50] sm:$0xff]
        %v1112 = vld [vmem:[%s1100 + $0x58] sm:$0xff]
        %v1114 = vsel %vm813, %v792, 0
        %1116 = vmatprep.subr.bf16.mxu0 0
        %1117 = vmatpush1.bf16.msra.mxu0 %v1101
        %1118 = vmatprep.subr.bf16.mxu0 0
        %1119 = vmatpush1.bf16.msra.mxu0 %v1102
        %1120 = vmatprep.subr.bf16.mxu0 0
        %1121 = vmatpush1.bf16.msra.mxu0 %v1103
        %1122 = vmatprep.subr.bf16.mxu0 0
        %1123 = vmatpush1.bf16.msra.mxu0 %v1104
        %1124 = vmatprep.subr.bf16.mxu0 0
        %1125 = vmatpush1.bf16.msra.mxu0 %v1105
        %1126 = vmatprep.subr.bf16.mxu0 0
        %1127 = vmatpush1.bf16.msra.mxu0 %v1106
        %1128 = vmatprep.subr.bf16.mxu0 0
        %1129 = vmatpush1.bf16.msra.mxu0 %v1107
        %1130 = vmatprep.subr.bf16.mxu0 0
        %1131 = vmatpush1.bf16.msra.mxu0 %v1108
        %1132 = vmatprep.subr.bf16.mxu0 0
        %1133 = vmatpush1.bf16.msra.mxu0 %v1109
        %1134 = vmatprep.subr.bf16.mxu0 0
        %1135 = vmatpush1.bf16.msra.mxu0 %v1110
        %1136 = vmatprep.subr.bf16.mxu0 0
        %1137 = vmatpush1.bf16.msra.mxu0 %v1111
        %1138 = vmatprep.subr.bf16.mxu0 0
        %1139 = vmatpush1.bf16.msra.mxu0 %v1112
        %1140 = vmatprep.subr.bf16.mxu0 0
        %1141 = vmatpush1.bf16.msra.mxu0 0
        %1142 = vmatprep.subr.bf16.mxu0 0
        %1143 = vmatpush1.bf16.msra.mxu0 0
        %1144 = vmatprep.subr.bf16.mxu0 0
        %1145 = vmatpush1.bf16.msra.mxu0 0
        %1146 = vmatprep.subr.bf16.mxu0 0
        %1147 = vmatpush1.bf16.msra.mxu0 0
        %1148 = vmatprep.mubr.bf16.mxu0 %v883
        %1149 = vmatmul.mubr.bf16.gmra.mrb[0].mxu0 %v824
        %v1150 = vpop.f32.mrb[0].mxu0
        %v1151 = vadd.f32 0.0, %v1150
        %v1152 = vpop.f32.mrb[0].mxu0
        %v1153 = vpop.f32.mrb[0].mxu0
        %v1154 = vadd.f32 0.0, %v1153
        %v1155 = vpop.f32.mrb[0].mxu0
        %1156 = vmatprep.mubr.bf16.mxu0 %v886
        %1157 = vmatmul.mubr.bf16.gmra.mrb[0].mxu0 %v828
        %v1158 = vpop.f32.mrb[0].mxu0
        %v1159 = vadd.f32 0.0, %v1158
        %v1160 = vpop.f32.mrb[0].mxu0
        %v1161 = vpop.f32.mrb[0].mxu0
        %v1162 = vadd.f32 0.0, %v1161
        %v1163 = vpop.f32.mrb[0].mxu0
        %1164 = vmatprep.mubr.bf16.mxu0 %v889
        %1165 = vmatmul.mubr.bf16.gmra.mrb[0].mxu0 %v832
        %v1166 = vpop.f32.mrb[0].mxu0
        %v1167 = vadd.f32 0.0, %v1166
        %v1168 = vpop.f32.mrb[0].mxu0
        %v1169 = vpop.f32.mrb[0].mxu0
        %v1170 = vadd.f32 0.0, %v1169
        %v1171 = vpop.f32.mrb[0].mxu0
        %1172 = vmatprep.mubr.bf16.mxu0 %v892
        %1173 = vmatmul.mubr.bf16.gmra.mrb[0].mxu0 %v836
        %v1174 = vpop.f32.mrb[0].mxu0
        %v1175 = vadd.f32 0.0, %v1174
        %v1176 = vpop.f32.mrb[0].mxu0
        %v1177 = vpop.f32.mrb[0].mxu0
        %v1178 = vadd.f32 0.0, %v1177
        %v1179 = vpop.f32.mrb[0].mxu0
        %1180 = vmatprep.mubr.bf16.mxu0 %v895
        %1181 = vmatmul.mubr.bf16.gmra.mrb[0].mxu0 %v840
        %v1182 = vpop.f32.mrb[0].mxu0
        %v1183 = vadd.f32 0.0, %v1182
        %v1184 = vpop.f32.mrb[0].mxu0
        %v1185 = vpop.f32.mrb[0].mxu0
        %v1186 = vadd.f32 0.0, %v1185
        %v1187 = vpop.f32.mrb[0].mxu0
        %1188 = vmatprep.mubr.bf16.mxu0 %v898
        %1189 = vmatmul.mubr.bf16.gmra.mrb[0].mxu0 %v844
        %v1190 = vpop.f32.mrb[0].mxu0
        %v1191 = vadd.f32 0.0, %v1190
        %v1192 = vpop.f32.mrb[0].mxu0
        %v1193 = vpop.f32.mrb[0].mxu0
        %v1194 = vadd.f32 0.0, %v1193
        %v1195 = vpop.f32.mrb[0].mxu0
        %1196 = vmatprep.mubr.bf16.mxu0 %v901
        %1197 = vmatmul.mubr.bf16.gmra.mrb[0].mxu0 %v848
        %v1198 = vpop.f32.mrb[0].mxu0
        %v1199 = vadd.f32 0.0, %v1198
        %v1200 = vpop.f32.mrb[0].mxu0
        %v1201 = vpop.f32.mrb[0].mxu0
        %v1202 = vadd.f32 0.0, %v1201
        %v1203 = vpop.f32.mrb[0].mxu0
        %1204 = vmatprep.mubr.bf16.mxu0 %v1114
        %1205 = vmatmul.mubr.bf16.gmra.mrb[0].mxu0 %v852
        %v1206 = vpop.f32.mrb[0].mxu0
        %v1207 = vadd.f32 0.0, %v1206
        %v1208 = vpop.f32.mrb[0].mxu0
        %v1209 = vpop.f32.mrb[0].mxu0
        %v1210 = vadd.f32 0.0, %v1209
        %v1211 = vpop.f32.mrb[0].mxu0
        %1212 = vdwg.mxu0
        %v1213 = vadd.f32 %v1038, %v1151
        %v1214 = vadd.f32 %v1041, %v1154
        %v1215 = vadd.f32 %v1046, %v1159
        %v1216 = vadd.f32 %v1049, %v1162
        %v1217 = vadd.f32 %v1054, %v1167
        %v1218 = vadd.f32 %v1057, %v1170
        %v1219 = vadd.f32 %v1062, %v1175
        %v1220 = vadd.f32 %v1065, %v1178
        %v1221 = vadd.f32 %v1070, %v1183
        %v1222 = vadd.f32 %v1073, %v1186
        %v1223 = vadd.f32 %v1078, %v1191
        %v1224 = vadd.f32 %v1081, %v1194
        %v1225 = vadd.f32 %v1086, %v1199
        %v1226 = vadd.f32 %v1089, %v1202
        %v1227 = vadd.f32 %v1094, %v1207
        %v1228 = vadd.f32 %v1097, %v1210
        %v1229 = vld [vmem:[%s3] sm:$0x1]
        %v1231 = vlaneseq
        %v1232 = vshrl.u32 %v1231, 7
        %v1233 = vsub.s32 0, %v1232
        %v1234 = vrot.slane %v1229, %v1233
        %v1236 = vadd.f32 %v1213, %v1234
        %v1237 = vadd.f32 %v1214, %v1234
        %v1238 = vadd.f32 %v1215, %v1234
        %v1239 = vadd.f32 %v1216, %v1234
        %v1240 = vadd.f32 %v1217, %v1234
        %v1241 = vadd.f32 %v1218, %v1234
        %v1242 = vadd.f32 %v1219, %v1234
        %v1243 = vadd.f32 %v1220, %v1234
        %v1244 = vadd.f32 %v1221, %v1234
        %v1245 = vadd.f32 %v1222, %v1234
        %v1246 = vadd.f32 %v1223, %v1234
        %v1247 = vadd.f32 %v1224, %v1234
        %v1248 = vadd.f32 %v1225, %v1234
        %v1249 = vadd.f32 %v1226, %v1234
        %v1250 = vadd.f32 %v1227, %v1234
        %v1251 = vadd.f32 %v1228, %v1234
        %v1252 = vmax.f32 %v1236, 0.0
        %v1253 = vmax.f32 %v1237, 0.0
        %v1254 = vmax.f32 %v1238, 0.0
        %v1255 = vmax.f32 %v1239, 0.0
        %v1256 = vmax.f32 %v1240, 0.0
        %v1257 = vmax.f32 %v1241, 0.0
        %v1258 = vmax.f32 %v1242, 0.0
        %v1259 = vmax.f32 %v1243, 0.0
        %v1260 = vmax.f32 %v1244, 0.0
        %v1261 = vmax.f32 %v1245, 0.0
        %v1262 = vmax.f32 %v1246, 0.0
        %v1263 = vmax.f32 %v1247, 0.0
        %v1264 = vmax.f32 %v1248, 0.0
        %v1265 = vmax.f32 %v1249, 0.0
        %v1266 = vmax.f32 %v1250, 0.0
        %v1267 = vmax.f32 %v1251, 0.0
        %v1268 = vld [vmem:[%s4] sm:$0x1]
        %v1270 = vlaneseq
        %v1271 = vshrl.u32 %v1270, 7
        %v1272 = vsub.s32 0, %v1271
        %v1273 = vrot.slane %v1268, %v1272
        %v1275 = vmul.f32 %v1252, %v1273
        %v1276 = vmul.f32 %v1253, %v1273
        %v1277 = vmul.f32 %v1254, %v1273
        %v1278 = vmul.f32 %v1255, %v1273
        %v1279 = vmul.f32 %v1256, %v1273
        %v1280 = vmul.f32 %v1257, %v1273
        %v1281 = vmul.f32 %v1258, %v1273
        %v1282 = vmul.f32 %v1259, %v1273
        %v1283 = vmul.f32 %v1260, %v1273
        %v1284 = vmul.f32 %v1261, %v1273
        %v1285 = vmul.f32 %v1262, %v1273
        %v1286 = vmul.f32 %v1263, %v1273
        %v1287 = vmul.f32 %v1264, %v1273
        %v1288 = vmul.f32 %v1265, %v1273
        %v1289 = vmul.f32 %v1266, %v1273
        %v1290 = vmul.f32 %v1267, %v1273
        %v1291 = vld [vmem:[%s5] sm:$0x1]
        %v1293 = vlaneseq
        %v1294 = vshrl.u32 %v1293, 7
        %v1295 = vsub.s32 0, %v1294
        %v1296 = vrot.slane %v1291, %v1295
        %v1298 = vadd.f32 %v1275, %v1296
        %v1299 = vadd.f32 %v1276, %v1296
        %v1300 = vadd.f32 %v1277, %v1296
        %v1301 = vadd.f32 %v1278, %v1296
        %v1302 = vadd.f32 %v1279, %v1296
        %v1303 = vadd.f32 %v1280, %v1296
        %v1304 = vadd.f32 %v1281, %v1296
        %v1305 = vadd.f32 %v1282, %v1296
        %v1306 = vadd.f32 %v1283, %v1296
        %v1307 = vadd.f32 %v1284, %v1296
        %v1308 = vadd.f32 %v1285, %v1296
        %v1309 = vadd.f32 %v1286, %v1296
        %v1310 = vadd.f32 %v1287, %v1296
        %v1311 = vadd.f32 %v1288, %v1296
        %v1312 = vadd.f32 %v1289, %v1296
        %v1313 = vadd.f32 %v1290, %v1296
        %1314 = vst.msk [vmem:[%s270] sm:$0xff] %vm813, %v1298
        %1315 = vst.msk [vmem:[%s270 + $0x8] sm:$0xff] %vm813, %v1299
        %1316 = vst.msk [vmem:[%s270 + $0x10] sm:$0xff] %vm813, %v1300
        %1317 = vst.msk [vmem:[%s270 + $0x18] sm:$0xff] %vm813, %v1301
        %1318 = vst.msk [vmem:[%s270 + $0x20] sm:$0xff] %vm813, %v1302
        %1319 = vst.msk [vmem:[%s270 + $0x28] sm:$0xff] %vm813, %v1303
        %1320 = vst.msk [vmem:[%s270 + $0x30] sm:$0xff] %vm813, %v1304
        %1321 = vst.msk [vmem:[%s270 + $0x38] sm:$0xff] %vm813, %v1305
        %1322 = vst.msk [vmem:[%s270 + $0x40] sm:$0xff] %vm813, %v1306
        %1323 = vst.msk [vmem:[%s270 + $0x48] sm:$0xff] %vm813, %v1307
        %1324 = vst.msk [vmem:[%s270 + $0x50] sm:$0xff] %vm813, %v1308
        %1325 = vst.msk [vmem:[%s270 + $0x58] sm:$0xff] %vm813, %v1309
        %1326 = vst.msk [vmem:[%s270 + $0x60] sm:$0xff] %vm813, %v1310
        %1327 = vst.msk [vmem:[%s270 + $0x68] sm:$0xff] %vm813, %v1311
        %1328 = vst.msk [vmem:[%s270 + $0x70] sm:$0xff] %vm813, %v1312
        %1329 = vst.msk [vmem:[%s270 + $0x78] sm:$0xff] %vm813, %v1313
        %s1330 = sand.u32 %s161, 1
        %s1331 = scalar_lea.sflag [#allocation5], %s1330
        %s1332 = sand.u32 %s161, 1
        %s1333 = smul.addr %s1332, 128
        %s1334 = scalar_lea.vmem [#allocation4], %s1333
        // Predicated region
        $region79: #{tpu_custom_call.1} parent=39 // pred_check
          %p1335 = pneg %p171
        $region80: #{tpu_custom_call.1} parent=39 // pred_check_branch
          %1337 = sbr.rel (%p1335) target = $region82
        $region81: #{tpu_custom_call.1} parent=39 // pred_region
          %s1338 = smul.u32 8, %s25
          %s1340 = ssub.s32 2048, 2048
          %1341 = vsyncadd %s1331, %s1340
          %s1342 = smul.addr %s1338, 2
          %s1343 = smul.addr %s24, 32
          %s1344 = sadd.s32 %s1342, %s1343
          %s1345 = smul.addr %s1344, 128
          %s1346 = scalar_lea.hbm %s6, %s1345
          %s1347 = sshll.u32 %s1334, 4
          %s1348 = int_to_ptr.vmem [resolvable:$true] %s1347
          %1353 = dma.vmem_to_hbm [thread:$0]  %s1348, 2048, %s1346, %s1331, 128, 128, 8
        $region82: #{tpu_custom_call.1} parent=39 // pred_fallthru
          _
      $region40: #{tpu_custom_call.1} parent=5 // pred_fallthru
        _
      %p1354 = scmp.le.s32.totalorder 2, %s15
      // Predicated region
      $region83: #{tpu_custom_call.1} parent=5 // pred_check
        %p1355 = pneg %p1354
      $region84: #{tpu_custom_call.1} parent=5 // pred_check_branch
        %1357 = sbr.rel (%p1355) target = $region86
      $region85: #{tpu_custom_call.1} parent=5 // pred_region
        %s1358 = ssub.s32 %s15, 2
        // Predicated region
        $region87: #{tpu_custom_call.1} parent=85 // pred_check
          %p1359 = pneg %p177
        $region88: #{tpu_custom_call.1} parent=85 // pred_check_branch
          %1361 = sbr.rel (%p1359) target = $region90
        $region89: #{tpu_custom_call.1} parent=85 // pred_region
          %s1362 = sand.u32 %s162, 1
          %s1363 = scalar_lea.sflag [#allocation5], %s1362
          %s1364 = sand.u32 %s162, 1
          %s1365 = smul.addr %s1364, 128
          %s1366 = scalar_lea.vmem [#allocation4], %s1365
          %1367 = dma.done %s1363, 2048
        $region90: #{tpu_custom_call.1} parent=85 // pred_fallthru
          _
      $region86: #{tpu_custom_call.1} parent=5 // pred_fallthru
        _
    $region6: #{tpu_custom_call.1} parent=1 // loop_footer
      %s19 = sadd.s32 1, %s15
    $region7: #{tpu_custom_call.1} parent=1 // loop_footer_branch
      %14 = sbr.rel target = $region3
    $region8: #{tpu_custom_call.1} parent=1 // loop_exit
      _
    %1368 = vsyncpa [#allocation5], 1
    %s1369 = scalar_lea.sflag [#allocation5], 1
    %1370 = vsyncpa %s1369, 1
  %1371 = vsyncmov [#allocation3]
  %s1372 = vpop.sfrf %1371
  %p1373 = scmp.eq.s32.totalorder %s1372, 0
  %p1374 = pneg %p1373
  %1376 = shalt.err (%p1374)

</llo_original>
